<compile_context>
chip_gen: v7x
topology: tpu7x:2x2x1
jax: 0.10.0
libtpu: 0.0.40
codegen_flags: <defaults>
</compile_context>

<pallas_src>
import math

import jax
import jax.numpy as jnp
from jax.experimental import pallas as pl
from jax.experimental.pallas import tpu as pltpu

_INV_SQRT2 = 0.7071067811865476


def _round_up(x, m):
    return (x + m - 1) // m * m


def _cdiv(a, b):
    return (a + b - 1) // b


def _gelu_exact(h):
    # Exact (erf) GELU -- matches torch.nn.GELU() default (approximate='none').
    return 0.5 * h * (1.0 + jax.lax.erf(h * _INV_SQRT2))


def _maybe_pad2d(a, rows, cols):
    r, c = a.shape
    if r == rows and c == cols:
        return a
    return jnp.pad(a, ((0, rows - r), (0, cols - c)))


def _maybe_pad1d(a, n):
    return a if a.shape[0] == n else jnp.pad(a, (0, n - a.shape[0]))


def _vmem_capacity_bytes():
    """Per-core VMEM capacity; conservative 64 MiB (v7x) fallback."""
    try:
        info = pltpu.get_tpu_info()
        for attr in ("vmem_capacity_bytes", "vmem_bytes", "vmem_size_bytes"):
            v = getattr(info, attr, None)
            if v:
                return int(v)
    except Exception:
        pass
    return 64 * 1024 * 1024


# --------------------------------------------------------------------------
# Kernel bodies
# --------------------------------------------------------------------------
def _make_resident_kernel(th, n_hidden_tiles):
    """1-D grid kernel: weights resident in VMEM, loop over hidden slices."""

    def kernel(x_ref, w1_ref, b1_ref, w2_ref, b2_ref, o_ref):
        # x_ref:  (tm, Kp)   activation row tile (compute dtype)
        # w1_ref: (Kp, Hp)   full fc1 weight, resident
        # b1_ref: (1,  Hp)   fc1 bias (f32), resident
        # w2_ref: (Hp, Np)   full fc2 weight, resident
        # b2_ref: (1,  Np)   fc2 bias (f32), resident
        # o_ref:  (tm, Np)   output row tile
        x = x_ref[...]
        acc = jnp.zeros((x_ref.shape[0], o_ref.shape[1]), jnp.float32)
        for k in range(n_hidden_tiles):
            s = k * th  # static, lane-aligned slice start
            h = jnp.dot(x, w1_ref[:, pl.ds(s, th)],
                        preferred_element_type=jnp.float32)
            h = h + b1_ref[:, pl.ds(s, th)]
            h = _gelu_exact(h)
            acc = acc + jnp.dot(h.astype(w2_ref.dtype),
                                w2_ref[pl.ds(s, th), :],
                                preferred_element_type=jnp.float32)
        o_ref[...] = (acc + b2_ref[...]).astype(o_ref.dtype)

    return kernel


def _mlp_streamed_kernel(x_ref, w1_ref, b1_ref, w2_ref, b2_ref, o_ref, acc_ref):
    """2-D grid fallback: stream W1/W2 hidden slabs, accumulate fc2 in VMEM."""
    k = pl.program_id(1)

    @pl.when(k == 0)
    def _():
        acc_ref[...] = jnp.zeros_like(acc_ref)

    h = jnp.dot(x_ref[...], w1_ref[...], preferred_element_type=jnp.float32)
    h = h + b1_ref[...]
    h = _gelu_exact(h)
    acc_ref[...] += jnp.dot(
        h.astype(w2_ref.dtype), w2_ref[...], preferred_element_type=jnp.float32
    )

    @pl.when(k == pl.num_programs(1) - 1)
    def _():
        o_ref[...] = (acc_ref[...] + b2_ref[...]).astype(o_ref.dtype)


# --------------------------------------------------------------------------
# Wrapper
# --------------------------------------------------------------------------
def mlp_block(x, w1, b1, w2, b2, *, tm=None, th=None, compute_dtype=jnp.bfloat16):
    """MlpBlock forward: gelu(x @ w1 + b1) @ w2 + b2.

    x:  (..., in_dim)
    w1: (in_dim, mlp_dim)    (= torch fc1.weight.T)
    b1: (mlp_dim,)
    w2: (mlp_dim, out_dim)   (= torch fc2.weight.T; out_dim == mlp_dim in MlpBlock)
    b2: (out_dim,)
    returns (..., out_dim) in x.dtype
    """
    orig_dtype = x.dtype
    *lead, in_dim = x.shape
    mlp_dim = w1.shape[1]
    out_dim = w2.shape[1]
    assert w1.shape == (in_dim, mlp_dim)
    assert w2.shape[0] == mlp_dim
    assert b1.shape == (mlp_dim,) and b2.shape == (out_dim,)

    M = int(math.prod(lead)) if lead else 1
    x2d = x.reshape(M, in_dim)

    # Lane / MXU friendly padded dims.
    Kp = _round_up(in_dim, 128)
    Hp = _round_up(mlp_dim, 128)
    Np = _round_up(out_dim, 128)

    csz = jnp.dtype(compute_dtype).itemsize
    osz = jnp.dtype(orig_dtype).itemsize

    vmem_cap = _vmem_capacity_bytes()
    budget = max(vmem_cap - (16 << 20), 24 << 20)  # keep headroom for internal scratch

    # ---- tile-size helpers -------------------------------------------------
    def pick_th(pref):
        t = min(_round_up(max(pref, 128), 128), Hp)
        while Hp % t:
            t -= 128
        return max(t, 128)

    def pick_tm(pref):
        t = min(_round_up(max(pref, 8), 8), _round_up(M, 8))
        # Prefer >= 2 row tiles so the "parallel" axis can split across v7x's 2 TCs.
        if M > 8 and _cdiv(M, t) < 2:
            t = _round_up(_cdiv(M, 2), 8)
        return t

    # ---- working-set models (conservative: all pipelined inputs x2 buffers) -
    resident_weight_bytes = 2 * (Kp * Hp + Hp * Np) * csz + 2 * (Hp + Np) * 4

    def resident_working(tm_, th_):
        return (2 * tm_ * Kp * csz          # x row tile (double buffered)
                + 2 * tm_ * Np * osz        # output tile (double buffered)
                + tm_ * Np * 4              # f32 accumulator value
                + tm_ * th_ * (4 + csz))    # GELU intermediate (f32 + cast)

    def streamed_working(tm_, th_):
        return (2 * tm_ * Kp * csz          # x row tile
                + 2 * Kp * th_ * csz        # W1 hidden slab
                + 2 * th_ * Np * csz        # W2 hidden slab
                + 2 * tm_ * Np * osz        # output tile
                + tm_ * Np * 4              # f32 accumulator scratch
                + tm_ * th_ * (4 + csz)     # GELU intermediate
                + 2 * (th_ + Np) * 4)       # biases

    # ---- choose layout -------------------------------------------------------
    th_res = pick_th(512 if th is None else th)
    tm_res = pick_tm(256 if tm is None else tm)
    use_resident = resident_weight_bytes + resident_working(tm_res, th_res) <= budget

    if use_resident:
        tm_, th_ = tm_res, th_res
        vmem_est = resident_weight_bytes + resident_working(tm_, th_)
    else:
        # Streamed fallback: make each hidden step MXU-bound with big tm/th.
        tm_pref = (1024 if vmem_cap >= (96 << 20) else 512) if tm is None else tm
        tm_ = pick_tm(tm_pref)
        th_ = pick_th(1024 if th is None else th)
        while tm_ > 256 and streamed_working(tm_, th_) > budget:
            tm_ = max(256, _round_up(tm_ // 2, 8))
        while th_ > 128 and streamed_working(tm_, th_) > budget:
            th_ = pick_th(th_ - 128)
        vmem_est = streamed_working(tm_, th_)

    Mp = _round_up(M, tm_)

    # ---- pad / cast (no-ops when already aligned; hoist to init in a model) -
    xp = _maybe_pad2d(x2d.astype(compute_dtype), Mp, Kp)
    w1p = _maybe_pad2d(w1.astype(compute_dtype), Kp, Hp)
    w2p = _maybe_pad2d(w2.astype(compute_dtype), Hp, Np)
    b1p = _maybe_pad1d(b1.astype(jnp.float32), Hp).reshape(1, Hp)
    b2p = _maybe_pad1d(b2.astype(jnp.float32), Np).reshape(1, Np)

    vmem_limit = int(min(max(int(1.25 * vmem_est), 32 << 20), vmem_cap - (4 << 20)))
    vmem_limit = max(vmem_limit, 16 << 20)

    # ---- honest cost estimate ------------------------------------------------
    n_row_tiles = Mp // tm_
    gelu_flops_per_elem = 8  # erf lowers to a VPU polynomial, not an EUP op
    flops = 2 * Mp * Kp * Hp + 2 * Mp * Hp * Np + gelu_flops_per_elem * Mp * Hp
    weight_bytes = (Kp * Hp + Hp * Np) * csz
    w_traffic = weight_bytes if use_resident else n_row_tiles * weight_bytes
    cost = pl.CostEstimate(
        flops=flops,
        transcendentals=0,
        bytes_accessed=Mp * Kp * csz + w_traffic + (Hp + Np) * 4 + Mp * Np * osz,
    )

    if use_resident:
        kernel = _make_resident_kernel(th_, Hp // th_)
        out = pl.pallas_call(
            kernel,
            out_shape=jax.ShapeDtypeStruct((Mp, Np), orig_dtype),
            grid_spec=pltpu.PrefetchScalarGridSpec(
                num_scalar_prefetch=0,
                grid=(Mp // tm_,),
                in_specs=[
                    pl.BlockSpec((tm_, Kp), lambda i: (i, 0)),  # x row tile
                    pl.BlockSpec((Kp, Hp), lambda i: (0, 0)),   # W1 (resident)
                    pl.BlockSpec((1, Hp), lambda i: (0, 0)),    # b1 (resident)
                    pl.BlockSpec((Hp, Np), lambda i: (0, 0)),   # W2 (resident)
                    pl.BlockSpec((1, Np), lambda i: (0, 0)),    # b2 (resident)
                ],
                out_specs=pl.BlockSpec((tm_, Np), lambda i: (i, 0)),
            ),
            compiler_params=pltpu.CompilerParams(
                dimension_semantics=("parallel",),
                vmem_limit_bytes=vmem_limit,
            ),
            cost_estimate=cost,
        )(xp, w1p, b1p, w2p, b2p)
    else:
        out = pl.pallas_call(
            _mlp_streamed_kernel,
            out_shape=jax.ShapeDtypeStruct((Mp, Np), orig_dtype),
            grid_spec=pltpu.PrefetchScalarGridSpec(
                num_scalar_prefetch=0,
                grid=(Mp // tm_, Hp // th_),
                in_specs=[
                    pl.BlockSpec((tm_, Kp), lambda i, k: (i, 0)),  # x row tile
                    pl.BlockSpec((Kp, th_), lambda i, k: (0, k)),  # W1 slab
                    pl.BlockSpec((1, th_), lambda i, k: (0, k)),   # b1 slice
                    pl.BlockSpec((th_, Np), lambda i, k: (k, 0)),  # W2 slab
                    pl.BlockSpec((1, Np), lambda i, k: (0, 0)),    # b2
                ],
                out_specs=pl.BlockSpec((tm_, Np), lambda i, k: (i, 0)),
                scratch_shapes=[pltpu.VMEM((tm_, Np), jnp.float32)],
            ),
            compiler_params=pltpu.CompilerParams(
                dimension_semantics=("parallel", "arbitrary"),
                vmem_limit_bytes=vmem_limit,
            ),
            cost_estimate=cost,
        )(xp, w1p, b1p, w2p, b2p)

    return out[:M, :out_dim].reshape(*lead, out_dim)


def _reference(x, w1, b1, w2, b2):
    h = x @ w1 + b1
    h = _gelu_exact(h)
    return h @ w2 + b2


if __name__ == "__main__":
    # Small shapes consistent with MlpBlock(in_dim, mlp_dim) applied to
    # (batch, seq, in_dim) activations; lane-aligned dims, M=512 -> 2 row tiles
    # (so the parallel axis also splits evenly across v7x's 2 TensorCores).
    batch, seq = 2, 256
    in_dim, mlp_dim = 128, 256

    key = jax.random.PRNGKey(0)
    kx, kw1, kb1, kw2, kb2 = jax.random.split(key, 5)

    x = jax.random.normal(kx, (batch, seq, in_dim), dtype=jnp.float32)

    # nn.Linear(in, out): weight (out, in), bias (out,). Pre-transposed to
    # (in, out) for the kernel (plain-JAX glue, done once at init in a model).
    w1 = (jax.random.normal(kw1, (mlp_dim, in_dim), dtype=jnp.float32) * 0.02).T
    b1 = jax.random.normal(kb1, (mlp_dim,), dtype=jnp.float32) * 0.02
    w2 = (jax.random.normal(kw2, (mlp_dim, mlp_dim), dtype=jnp.float32) * 0.02).T
    b2 = jax.random.normal(kb2, (mlp_dim,), dtype=jnp.float32) * 0.02

    fn = jax.jit(mlp_block)
    y = fn(x, w1, b1, w2, b2)
    jax.block_until_ready(y)

    y_ref = _reference(x.reshape(-1, in_dim), w1, b1, w2, b2).reshape(
        batch, seq, mlp_dim
    )
    assert y.shape == (batch, seq, mlp_dim)
    # bf16 matmuls with f32 accumulation vs. f32 reference -> loosened tolerance.
    assert jnp.allclose(y, y_ref, atol=1e-2, rtol=1e-2), float(
        jnp.max(jnp.abs(y - y_ref))
    )

    print("KERNEL_OK")
</pallas_src>

<mosaic_0001>
module attributes {stable_mosaic.version = 11 : i64} {
  func.func @kernel(%arg0: i32, %arg1: memref<256x128xbf16, #tpu.memory_space<vmem>>, %arg2: memref<128x256xbf16, #tpu.memory_space<vmem>>, %arg3: memref<1x256xf32, #tpu.memory_space<vmem>>, %arg4: memref<256x256xbf16, #tpu.memory_space<vmem>>, %arg5: memref<1x256xf32, #tpu.memory_space<vmem>>, %arg6: memref<256x256xf32, #tpu.memory_space<vmem>>) attributes {dimension_semantics = [#tpu.dimension_semantics<parallel>], iteration_bounds = array<i64: 2>, scalar_prefetch = 0 : i64, scratch_operands = 0 : i64, tpu.core_type = #tpu.core_type<tc>, window_params = [{transform_indices = @transform_0, window_bounds = array<i64: 256, 128>}, {pipeline_mode = #tpu.pipeline_mode<synchronous>, transform_indices = @transform_1, window_bounds = array<i64: 128, 256>}, {pipeline_mode = #tpu.pipeline_mode<synchronous>, transform_indices = @transform_2, window_bounds = array<i64: 1, 256>}, {pipeline_mode = #tpu.pipeline_mode<synchronous>, transform_indices = @transform_3, window_bounds = array<i64: 256, 256>}, {pipeline_mode = #tpu.pipeline_mode<synchronous>, transform_indices = @transform_4, window_bounds = array<i64: 1, 256>}, {transform_indices = @transform_5, window_bounds = array<i64: 256, 256>}]} {
    %c0 = arith.constant 0 : index
    %c0_0 = arith.constant 0 : index
    %0 = vector.load %arg1[%c0, %c0_0] : memref<256x128xbf16, #tpu.memory_space<vmem>>, vector<256x128xbf16>
    %cst = arith.constant 0.000000e+00 : f32
    %1 = vector.broadcast %cst : f32 to vector<256x256xf32>
    %c0_1 = arith.constant 0 : index
    %c0_2 = arith.constant 0 : index
    %2 = vector.load %arg2[%c0_1, %c0_2] : memref<128x256xbf16, #tpu.memory_space<vmem>>, vector<128x256xbf16>
    %cst_3 = arith.constant dense<0.000000e+00> : vector<256x256xf32>
    %3 = tpu.matmul %0, %2, %cst_3 {dimension_numbers = #tpu.dot_dimension_numbers<[1], [0], [0], [1], [0, 0, 1, 1], [], []>} : vector<256x128xbf16>, vector<128x256xbf16>, vector<256x256xf32> -> vector<256x256xf32>
    %c0_4 = arith.constant 0 : index
    %c0_5 = arith.constant 0 : index
    %4 = vector.load %arg3[%c0_4, %c0_5] : memref<1x256xf32, #tpu.memory_space<vmem>>, vector<1x256xf32>
    %5 = vector.broadcast %4 : vector<1x256xf32> to vector<256x256xf32>
    %6 = arith.addf %3, %5 : vector<256x256xf32>
    %cst_6 = arith.constant 5.000000e-01 : f32
    %7 = vector.broadcast %cst_6 : f32 to vector<256x256xf32>
    %8 = arith.mulf %7, %6 : vector<256x256xf32>
    %cst_7 = arith.constant 0.707106769 : f32
    %9 = vector.broadcast %cst_7 : f32 to vector<256x256xf32>
    %10 = arith.mulf %6, %9 : vector<256x256xf32>
    %11 = math.erf %10 : vector<256x256xf32>
    %cst_8 = arith.constant 1.000000e+00 : f32
    %12 = vector.broadcast %cst_8 : f32 to vector<256x256xf32>
    %13 = arith.addf %12, %11 : vector<256x256xf32>
    %14 = arith.mulf %8, %13 : vector<256x256xf32>
    %15 = arith.truncf %14 : vector<256x256xf32> to vector<256x256xbf16>
    %c0_9 = arith.constant 0 : index
    %c0_10 = arith.constant 0 : index
    %16 = vector.load %arg4[%c0_9, %c0_10] : memref<256x256xbf16, #tpu.memory_space<vmem>>, vector<256x256xbf16>
    %cst_11 = arith.constant dense<0.000000e+00> : vector<256x256xf32>
    %17 = tpu.matmul %15, %16, %cst_11 {dimension_numbers = #tpu.dot_dimension_numbers<[1], [0], [0], [1], [0, 0, 1, 1], [], []>} : vector<256x256xbf16>, vector<256x256xbf16>, vector<256x256xf32> -> vector<256x256xf32>
    %18 = arith.addf %1, %17 : vector<256x256xf32>
    %c0_12 = arith.constant 0 : index
    %c0_13 = arith.constant 0 : index
    %19 = vector.load %arg5[%c0_12, %c0_13] : memref<1x256xf32, #tpu.memory_space<vmem>>, vector<1x256xf32>
    %20 = vector.broadcast %19 : vector<1x256xf32> to vector<256x256xf32>
    %21 = arith.addf %18, %20 : vector<256x256xf32>
    %c0_14 = arith.constant 0 : index
    %c0_15 = arith.constant 0 : index
    %22 = vector.load %arg6[%c0_14, %c0_15] : memref<256x256xf32, #tpu.memory_space<vmem>>, vector<256x256xf32>
    tpu.vector_store %arg6[%c0_14, %c0_15], %21 {strides = array<i32>} : memref<256x256xf32, #tpu.memory_space<vmem>>, vector<256x256xf32>,
    return
  }
  func.func @transform_0(%arg0: i32) -> (i32, i32) {
    %c0_i32 = arith.constant 0 : i32
    %c0_i32_0 = arith.constant 0 : i32
    return %arg0, %c0_i32 : i32, i32
  }
  func.func @transform_1(%arg0: i32) -> (i32, i32) {
    %c0_i32 = arith.constant 0 : i32
    %c0_i32_0 = arith.constant 0 : i32
    %c0_i32_1 = arith.constant 0 : i32
    return %c0_i32, %c0_i32_0 : i32, i32
  }
  func.func @transform_2(%arg0: i32) -> (i32, i32) {
    %c0_i32 = arith.constant 0 : i32
    %c0_i32_0 = arith.constant 0 : i32
    %c0_i32_1 = arith.constant 0 : i32
    return %c0_i32, %c0_i32_0 : i32, i32
  }
  func.func @transform_3(%arg0: i32) -> (i32, i32) {
    %c0_i32 = arith.constant 0 : i32
    %c0_i32_0 = arith.constant 0 : i32
    %c0_i32_1 = arith.constant 0 : i32
    return %c0_i32, %c0_i32_0 : i32, i32
  }
  func.func @transform_4(%arg0: i32) -> (i32, i32) {
    %c0_i32 = arith.constant 0 : i32
    %c0_i32_0 = arith.constant 0 : i32
    %c0_i32_1 = arith.constant 0 : i32
    return %c0_i32, %c0_i32_0 : i32, i32
  }
  func.func @transform_5(%arg0: i32) -> (i32, i32) {
    %c0_i32 = arith.constant 0 : i32
    %c0_i32_0 = arith.constant 0 : i32
    return %arg0, %c0_i32 : i32, i32
  }
}

</mosaic_0001>

<llo_original>
// kernel: mlp_block.1
$region0: #{mlp_block.1}
  #allocation0 [shape = 'u32[]', space=smem, size = 0x4, offset = 0x4, fixed_abs, tag = 'smem constant byte address 0x4 - core index']
  #allocation1 [shape = 'u32[144,128]{1,0:T(1,128)}', space=vmem, size = 0x12000, scoped, tag = 'internal scratch']
  %s0 = inlined_call_operand.vmem [shape: bf16[512,128], index: 0, kind: input, shape index: {}]
  %s1 = inlined_call_operand.vmem [shape: bf16[128,256], index: 1, kind: input, shape index: {}]
  %s2 = inlined_call_operand.vmem [shape: f32[1,256], index: 2, kind: input, shape index: {}]
  %s3 = inlined_call_operand.vmem [shape: bf16[256,256], index: 3, kind: input, shape index: {}]
  %s4 = inlined_call_operand.vmem [shape: f32[1,256], index: 4, kind: input, shape index: {}]
  %s5 = inlined_call_operand.hbm [shape: f32[512,256], index: 5, kind: output, shape index: {}]
  %s6 = sld [smem:[#allocation0]]
  $region53: #{mlp_block.1} parent=0
    _
  %s8 = ssub.s32 1, %s6
  %s9 = scalar_select 0, %s8, %s6
  $region1: #{mlp_block.1} parent=0
    #allocation2 [shape = 'u8[524288]{0}', space=vmem, size = 0x80000, scoped, tag = 'output window, operand 0']
    #allocation3 [shape = 's32[2]{0}', space=sflag, size = 0x8, scoped, tag = 'scoped memory for mlp_block.1']
    %10 = vsyncpa [#allocation3], 0
    %s11 = scalar_lea.sflag [#allocation3], 1
    %12 = vsyncpa %s11, 0
    loop: start=0, step=1, limit=4
    $region2: #{mlp_block.1} parent=1 // loop_pre_header
      _
    $region3: #{mlp_block.1} parent=1 // loop_header
      %s14 = sphi 0, %s18
      %p15 = scmp.ge.s32.totalorder %s14, 4
      %s24 = sphi 0, %s26
      %s27 = sphi 0, %s24
      %s28 = sphi 0, %s27
      %s44 = sphi 0, %s28
      %s48 = sphi 0, %s48
      %s50 = sphi 0, %s48
      %s51 = sphi 0, %s50
      %s65 = sphi 0, %s51
      %s69 = sphi 0, %s69
      %s71 = sphi 0, %s69
      %s72 = sphi 0, %s71
      %s86 = sphi 0, %s72
      %s90 = sphi 0, %s90
      %s92 = sphi 0, %s90
      %s93 = sphi 0, %s92
      %s107 = sphi 0, %s93
      %s111 = sphi 0, %s111
      %s113 = sphi 0, %s111
      %s114 = sphi 0, %s113
      %s128 = sphi 0, %s114
      %s134 = sphi 0, %s136
      %s137 = sphi 0, %s134
      %s138 = sphi 0, %s137
      %s154 = sphi 0, %s138
    $region4: #{mlp_block.1} parent=1 // loop_header_branch
      %17 = sbr.rel (%p15) target = $region8
    $region5: #{mlp_block.1} parent=1 // loop_body
      %s19 = ssub.s32 %s14, 1
      %s20 = ssub.s32 %s14, 2
      %s21 = sadd.s32 %s14, 1
      %s22 = ssub.s32 %s14, %s21
      %p23 = scmp.eq.s32.totalorder %s22, 0
      %s25 = sadd.s32 %s24, 1
      %s26 = scalar_select %p23, %s24, %s25
      %p29 = pneg %p23
      %p30 = scmp.eq.s32.totalorder %s14, 1
      %p31 = por %p29, %p30
      %p32 = scmp.ne.s32.totalorder %s24, %s27
      %p33 = scmp.eq.s32.totalorder %s14, 0
      %p34 = por %p32, %p33
      %p35 = scmp.ne.s32.totalorder %s24, %s27
      %p36 = scmp.eq.s32.totalorder %s19, 1
      %p37 = por %p35, %p36
      %p38 = scmp.ne.s32.totalorder %s27, %s28
      %p39 = scmp.eq.s32.totalorder %s19, 0
      %p40 = por %p38, %p39
      %p41 = scmp.ne.s32.totalorder %s27, %s28
      %p42 = scmp.eq.s32.totalorder %s20, 1
      %p43 = por %p41, %p42
      %p45 = scmp.ne.s32.totalorder %s28, %s44
      %p46 = scmp.eq.s32.totalorder %s20, 0
      %p47 = por %p45, %p46
      %s49 = sadd.s32 %s48, 1
      %p52 = scmp.eq.s32.totalorder %s14, 1
      %p53 = scmp.ne.s32.totalorder %s48, %s50
      %p54 = scmp.eq.s32.totalorder %s14, 0
      %p55 = por %p53, %p54
      %p56 = scmp.ne.s32.totalorder %s48, %s50
      %p57 = scmp.eq.s32.totalorder %s19, 1
      %p58 = por %p56, %p57
      %p59 = scmp.ne.s32.totalorder %s50, %s51
      %p60 = scmp.eq.s32.totalorder %s19, 0
      %p61 = por %p59, %p60
      %p62 = scmp.ne.s32.totalorder %s50, %s51
      %p63 = scmp.eq.s32.totalorder %s20, 1
      %p64 = por %p62, %p63
      %p66 = scmp.ne.s32.totalorder %s51, %s65
      %p67 = scmp.eq.s32.totalorder %s20, 0
      %p68 = por %p66, %p67
      %s70 = sadd.s32 %s69, 1
      %p73 = scmp.eq.s32.totalorder %s14, 1
      %p74 = scmp.ne.s32.totalorder %s69, %s71
      %p75 = scmp.eq.s32.totalorder %s14, 0
      %p76 = por %p74, %p75
      %p77 = scmp.ne.s32.totalorder %s69, %s71
      %p78 = scmp.eq.s32.totalorder %s19, 1
      %p79 = por %p77, %p78
      %p80 = scmp.ne.s32.totalorder %s71, %s72
      %p81 = scmp.eq.s32.totalorder %s19, 0
      %p82 = por %p80, %p81
      %p83 = scmp.ne.s32.totalorder %s71, %s72
      %p84 = scmp.eq.s32.totalorder %s20, 1
      %p85 = por %p83, %p84
      %p87 = scmp.ne.s32.totalorder %s72, %s86
      %p88 = scmp.eq.s32.totalorder %s20, 0
      %p89 = por %p87, %p88
      %s91 = sadd.s32 %s90, 1
      %p94 = scmp.eq.s32.totalorder %s14, 1
      %p95 = scmp.ne.s32.totalorder %s90, %s92
      %p96 = scmp.eq.s32.totalorder %s14, 0
      %p97 = por %p95, %p96
      %p98 = scmp.ne.s32.totalorder %s90, %s92
      %p99 = scmp.eq.s32.totalorder %s19, 1
      %p100 = por %p98, %p99
      %p101 = scmp.ne.s32.totalorder %s92, %s93
      %p102 = scmp.eq.s32.totalorder %s19, 0
      %p103 = por %p101, %p102
      %p104 = scmp.ne.s32.totalorder %s92, %s93
      %p105 = scmp.eq.s32.totalorder %s20, 1
      %p106 = por %p104, %p105
      %p108 = scmp.ne.s32.totalorder %s93, %s107
      %p109 = scmp.eq.s32.totalorder %s20, 0
      %p110 = por %p108, %p109
      %s112 = sadd.s32 %s111, 1
      %p115 = scmp.eq.s32.totalorder %s14, 1
      %p116 = scmp.ne.s32.totalorder %s111, %s113
      %p117 = scmp.eq.s32.totalorder %s14, 0
      %p118 = por %p116, %p117
      %p119 = scmp.ne.s32.totalorder %s111, %s113
      %p120 = scmp.eq.s32.totalorder %s19, 1
      %p121 = por %p119, %p120
      %p122 = scmp.ne.s32.totalorder %s113, %s114
      %p123 = scmp.eq.s32.totalorder %s19, 0
      %p124 = por %p122, %p123
      %p125 = scmp.ne.s32.totalorder %s113, %s114
      %p126 = scmp.eq.s32.totalorder %s20, 1
      %p127 = por %p125, %p126
      %p129 = scmp.ne.s32.totalorder %s114, %s128
      %p130 = scmp.eq.s32.totalorder %s20, 0
      %p131 = por %p129, %p130
      %s132 = ssub.s32 %s14, %s21
      %p133 = scmp.eq.s32.totalorder %s132, 0
      %s135 = sadd.s32 %s134, 1
      %s136 = scalar_select %p133, %s134, %s135
      %p139 = pneg %p133
      %p140 = scmp.eq.s32.totalorder %s14, 1
      %p141 = por %p139, %p140
      %p142 = scmp.ne.s32.totalorder %s134, %s137
      %p143 = scmp.eq.s32.totalorder %s14, 0
      %p144 = por %p142, %p143
      %p145 = scmp.ne.s32.totalorder %s134, %s137
      %p146 = scmp.eq.s32.totalorder %s19, 1
      %p147 = por %p145, %p146
      %p148 = scmp.ne.s32.totalorder %s137, %s138
      %p149 = scmp.eq.s32.totalorder %s19, 0
      %p150 = por %p148, %p149
      %p151 = scmp.ne.s32.totalorder %s137, %s138
      %p152 = scmp.eq.s32.totalorder %s20, 1
      %p153 = por %p151, %p152
      %p155 = scmp.ne.s32.totalorder %s138, %s154
      %p156 = scmp.eq.s32.totalorder %s20, 0
      %p157 = por %p155, %p156
      %p158 = scmp.le.s32.totalorder 1, %s14
      %p159 = scmp.lt.s32.totalorder %s14, 3
      %p160 = pnand %p158, %p159
      %p161 = pneg %p160
      // Predicated region
      $region9: #{mlp_block.1} parent=5 // pred_check
        _
      $region10: #{mlp_block.1} parent=5 // pred_check_branch
        %163 = sbr.rel (%p160) target = $region12
      $region11: #{mlp_block.1} parent=5 // pred_region
        %s164 = ssub.s32 %s14, 1
        // Predicated region
        $region13: #{mlp_block.1} parent=11 // pred_check
          %p165 = pneg %p61
        $region14: #{mlp_block.1} parent=11 // pred_check_branch
          %167 = sbr.rel (%p165) target = $region16
        $region15: #{mlp_block.1} parent=11 // pred_region
          _
        $region16: #{mlp_block.1} parent=11 // pred_fallthru
          _
        // Predicated region
        $region17: #{mlp_block.1} parent=11 // pred_check
          %p168 = pneg %p82
        $region18: #{mlp_block.1} parent=11 // pred_check_branch
          %170 = sbr.rel (%p168) target = $region20
        $region19: #{mlp_block.1} parent=11 // pred_region
          _
        $region20: #{mlp_block.1} parent=11 // pred_fallthru
          _
        // Predicated region
        $region21: #{mlp_block.1} parent=11 // pred_check
          %p171 = pneg %p103
        $region22: #{mlp_block.1} parent=11 // pred_check_branch
          %173 = sbr.rel (%p171) target = $region24
        $region23: #{mlp_block.1} parent=11 // pred_region
          _
        $region24: #{mlp_block.1} parent=11 // pred_fallthru
          _
        // Predicated region
        $region25: #{mlp_block.1} parent=11 // pred_check
          %p174 = pneg %p124
        $region26: #{mlp_block.1} parent=11 // pred_check_branch
          %176 = sbr.rel (%p174) target = $region28
        $region27: #{mlp_block.1} parent=11 // pred_region
          _
        $region28: #{mlp_block.1} parent=11 // pred_fallthru
          _
      $region12: #{mlp_block.1} parent=5 // pred_fallthru
        _
      %p177 = scmp.lt.s32.totalorder %s14, 2
      // Predicated region
      $region29: #{mlp_block.1} parent=5 // pred_check
        %p178 = pneg %p177
      $region30: #{mlp_block.1} parent=5 // pred_check_branch
        %180 = sbr.rel (%p178) target = $region32
      $region31: #{mlp_block.1} parent=5 // pred_region
        // Predicated region
        $region33: #{mlp_block.1} parent=31 // pred_check
          %p181 = pneg %p34
        $region34: #{mlp_block.1} parent=31 // pred_check_branch
          %183 = sbr.rel (%p181) target = $region36
        $region35: #{mlp_block.1} parent=31 // pred_region
          %s184 = smul.u32 32, %s14
          %p185 = scmp.lt.s32.totalorder %s184, 63
          %s186 = scalar_select %p185, %s184, 63
          %s187 = smul.addr %s186, 4
          %s188 = scalar_lea.vmem %s0, %s187
          %s189 = smul.u32 32, %s14
        $region36: #{mlp_block.1} parent=31 // pred_fallthru
          _
      $region32: #{mlp_block.1} parent=5 // pred_fallthru
        _
      %p190 = scmp.le.s32.totalorder 1, %s14
      %p191 = scmp.lt.s32.totalorder %s14, 3
      %p192 = pnand %p190, %p191
      %p193 = pneg %p192
      // Predicated region
      $region37: #{mlp_block.1} parent=5 // pred_check
        _
      $region38: #{mlp_block.1} parent=5 // pred_check_branch
        %195 = sbr.rel (%p192) target = $region40
      $region39: #{mlp_block.1} parent=5 // pred_region
        %s196 = ssub.s32 %s14, 1
        %s197 = smul.u32 32, %s19
        %p198 = scmp.lt.s32.totalorder %s197, 63
        %s199 = scalar_select %p198, %s197, 63
        %s200 = smul.addr %s199, 4
        %s201 = scalar_lea.vmem %s0, %s200
        %p202 = pneg %p40
        %p203 = pneg %p37
        %p204 = pneg %p61
        %p205 = pneg %p58
        %p206 = pneg %p82
        %p207 = pneg %p79
        %p208 = pneg %p103
        %p209 = pneg %p100
        %p210 = pneg %p124
        %p211 = pneg %p121
        %p212 = pneg %p150
        %p213 = pneg %p147
        %s214 = sand.u32 %s137, 1
        %s215 = scalar_lea.sflag [#allocation3], %s214
        %s216 = sand.u32 %s137, 1
        %s217 = smul.addr %s216, 512
        %s218 = scalar_lea.vmem [#allocation2], %s217
        %s219 = smul.u32 32, %s19
        %p220 = scmp.lt.s32.totalorder %s219, 63
        %s221 = scalar_select %p220, %s219, 63
        %s222 = smul.addr %s221, 4
        %s223 = scalar_lea.vmem %s0, %s222
        %s224 = smul.u32 32, %s19
        %s225 = smul.u32 32, %s19
        %v227 = vld [vmem:[%s223] sm:$0xf]
        %v228 = vld [vmem:[%s223 + $0x4] sm:$0xf]
        %v229 = vld [vmem:[%s223 + $0x8] sm:$0xf]
        %v230 = vld [vmem:[%s223 + $0xc] sm:$0xf]
        %v231 = vld [vmem:[%s223 + $0x10] sm:$0xf]
        %v232 = vld [vmem:[%s223 + $0x14] sm:$0xf]
        %v233 = vld [vmem:[%s223 + $0x18] sm:$0xf]
        %v234 = vld [vmem:[%s223 + $0x1c] sm:$0xf]
        %v235 = vld [vmem:[%s223 + $0x20] sm:$0xf]
        %v236 = vld [vmem:[%s223 + $0x24] sm:$0xf]
        %v237 = vld [vmem:[%s223 + $0x28] sm:$0xf]
        %v238 = vld [vmem:[%s223 + $0x2c] sm:$0xf]
        %v239 = vld [vmem:[%s223 + $0x30] sm:$0xf]
        %v240 = vld [vmem:[%s223 + $0x34] sm:$0xf]
        %v241 = vld [vmem:[%s223 + $0x38] sm:$0xf]
        %v242 = vld [vmem:[%s223 + $0x3c] sm:$0xf]
        %v243 = vld [vmem:[%s223 + $0x40] sm:$0xf]
        %v244 = vld [vmem:[%s223 + $0x44] sm:$0xf]
        %v245 = vld [vmem:[%s223 + $0x48] sm:$0xf]
        %v246 = vld [vmem:[%s223 + $0x4c] sm:$0xf]
        %v247 = vld [vmem:[%s223 + $0x50] sm:$0xf]
        %v248 = vld [vmem:[%s223 + $0x54] sm:$0xf]
        %v249 = vld [vmem:[%s223 + $0x58] sm:$0xf]
        %v250 = vld [vmem:[%s223 + $0x5c] sm:$0xf]
        %v251 = vld [vmem:[%s223 + $0x60] sm:$0xf]
        %v252 = vld [vmem:[%s223 + $0x64] sm:$0xf]
        %v253 = vld [vmem:[%s223 + $0x68] sm:$0xf]
        %v254 = vld [vmem:[%s223 + $0x6c] sm:$0xf]
        %v255 = vld [vmem:[%s223 + $0x70] sm:$0xf]
        %v256 = vld [vmem:[%s223 + $0x74] sm:$0xf]
        %v257 = vld [vmem:[%s223 + $0x78] sm:$0xf]
        %v258 = vld [vmem:[%s223 + $0x7c] sm:$0xf]
        %v259 = vld [vmem:[%s1] sm:$0xff]
        %v260 = vld [vmem:[%s1 + $0x8] sm:$0xff]
        %v261 = vld [vmem:[%s1 + $0x10] sm:$0xff]
        %v262 = vld [vmem:[%s1 + $0x18] sm:$0xff]
        %v263 = vld [vmem:[%s1 + $0x20] sm:$0xff]
        %v264 = vld [vmem:[%s1 + $0x28] sm:$0xff]
        %v265 = vld [vmem:[%s1 + $0x30] sm:$0xff]
        %v266 = vld [vmem:[%s1 + $0x38] sm:$0xff]
        %v267 = vld [vmem:[%s1 + $0x40] sm:$0xff]
        %v268 = vld [vmem:[%s1 + $0x48] sm:$0xff]
        %v269 = vld [vmem:[%s1 + $0x50] sm:$0xff]
        %v270 = vld [vmem:[%s1 + $0x58] sm:$0xff]
        %v271 = vld [vmem:[%s1 + $0x60] sm:$0xff]
        %v272 = vld [vmem:[%s1 + $0x68] sm:$0xff]
        %v273 = vld [vmem:[%s1 + $0x70] sm:$0xff]
        %v274 = vld [vmem:[%s1 + $0x78] sm:$0xff]
        %v275 = vld [vmem:[%s2] sm:$0x3]
        %v277 = vlaneseq
        %v278 = vshrl.u32 %v277, 7
        %v279 = vsub.s32 0, %v278
        %v280 = vrot.slane %v275, %v279
        %v281 = vlaneseq
        %v282 = vshrl.u32 %v281, 7
        %v283 = vsub.s32 1, %v282
        %v284 = vrot.slane %v275, %v283
        %v319 = vunpack.c.l.b16 %v227
        %v320 = vunpack.c.l.b16 %v228
        %v321 = vunpack.c.l.b16 %v229
        %v322 = vunpack.c.l.b16 %v230
        %v323 = vunpack.c.l.b16 %v231
        %v324 = vunpack.c.l.b16 %v232
        %v325 = vunpack.c.l.b16 %v233
        %v326 = vunpack.c.l.b16 %v234
        %v327 = vunpack.c.l.b16 %v235
        %v328 = vunpack.c.l.b16 %v236
        %v329 = vunpack.c.l.b16 %v237
        %v330 = vunpack.c.l.b16 %v238
        %v331 = vunpack.c.l.b16 %v239
        %v332 = vunpack.c.l.b16 %v240
        %v333 = vunpack.c.l.b16 %v241
        %v334 = vunpack.c.l.b16 %v242
        %v335 = vunpack.c.l.b16 %v243
        %v336 = vunpack.c.l.b16 %v244
        %v337 = vunpack.c.l.b16 %v245
        %v338 = vunpack.c.l.b16 %v246
        %v339 = vunpack.c.l.b16 %v247
        %v340 = vunpack.c.l.b16 %v248
        %v341 = vunpack.c.l.b16 %v249
        %v342 = vunpack.c.l.b16 %v250
        %v343 = vunpack.c.l.b16 %v251
        %v344 = vunpack.c.l.b16 %v252
        %v345 = vunpack.c.l.b16 %v253
        %v346 = vunpack.c.l.b16 %v254
        %v347 = vunpack.c.l.b16 %v255
        %v348 = vunpack.c.l.b16 %v256
        %v349 = vunpack.c.l.b16 %v257
        %v350 = vunpack.c.l.b16 %v258
        %v351 = vpack.c.b16 %v320, %v319
        %v352 = vpack.c.b16 %v322, %v321
        %v353 = vpack.c.b16 %v324, %v323
        %v354 = vpack.c.b16 %v326, %v325
        %v355 = vpack.c.b16 %v328, %v327
        %v356 = vpack.c.b16 %v330, %v329
        %v357 = vpack.c.b16 %v332, %v331
        %v358 = vpack.c.b16 %v334, %v333
        %v359 = vpack.c.b16 %v336, %v335
        %v360 = vpack.c.b16 %v338, %v337
        %v361 = vpack.c.b16 %v340, %v339
        %v362 = vpack.c.b16 %v342, %v341
        %v363 = vpack.c.b16 %v344, %v343
        %v364 = vpack.c.b16 %v346, %v345
        %v365 = vpack.c.b16 %v348, %v347
        %v366 = vpack.c.b16 %v350, %v349
        %v399 = vunpack.c.l.b16 %v259
        %v400 = vunpack.c.h.b16 %v259
        %v401 = vunpack.c.l.b16 %v260
        %v402 = vunpack.c.h.b16 %v260
        %v403 = vunpack.c.l.b16 %v261
        %v404 = vunpack.c.h.b16 %v261
        %v405 = vunpack.c.l.b16 %v262
        %v406 = vunpack.c.h.b16 %v262
        %v407 = vunpack.c.l.b16 %v263
        %v408 = vunpack.c.h.b16 %v263
        %v409 = vunpack.c.l.b16 %v264
        %v410 = vunpack.c.h.b16 %v264
        %v411 = vunpack.c.l.b16 %v265
        %v412 = vunpack.c.h.b16 %v265
        %v413 = vunpack.c.l.b16 %v266
        %v414 = vunpack.c.h.b16 %v266
        %v415 = vunpack.c.l.b16 %v267
        %v416 = vunpack.c.h.b16 %v267
        %v417 = vunpack.c.l.b16 %v268
        %v418 = vunpack.c.h.b16 %v268
        %v419 = vunpack.c.l.b16 %v269
        %v420 = vunpack.c.h.b16 %v269
        %v421 = vunpack.c.l.b16 %v270
        %v422 = vunpack.c.h.b16 %v270
        %v423 = vunpack.c.l.b16 %v271
        %v424 = vunpack.c.h.b16 %v271
        %v425 = vunpack.c.l.b16 %v272
        %v426 = vunpack.c.h.b16 %v272
        %v427 = vunpack.c.l.b16 %v273
        %v428 = vunpack.c.h.b16 %v273
        %v429 = vunpack.c.l.b16 %v274
        %v430 = vunpack.c.h.b16 %v274
        %v431 = vpack.c.b16 %v401, %v399
        %v432 = vpack.c.b16 %v402, %v400
        %v433 = vpack.c.b16 %v405, %v403
        %v434 = vpack.c.b16 %v406, %v404
        %v435 = vpack.c.b16 %v409, %v407
        %v436 = vpack.c.b16 %v410, %v408
        %v437 = vpack.c.b16 %v413, %v411
        %v438 = vpack.c.b16 %v414, %v412
        %v439 = vpack.c.b16 %v417, %v415
        %v440 = vpack.c.b16 %v418, %v416
        %v441 = vpack.c.b16 %v421, %v419
        %v442 = vpack.c.b16 %v422, %v420
        %v443 = vpack.c.b16 %v425, %v423
        %v444 = vpack.c.b16 %v426, %v424
        %v445 = vpack.c.b16 %v429, %v427
        %v446 = vpack.c.b16 %v430, %v428
        %463 = vmatprep.subr.bf16.mxu0 %v432
        %464 = vmatpush1.bf16.msra.mxu0 %v431
        %465 = vmatprep.subr.bf16.mxu0 %v434
        %466 = vmatpush1.bf16.msra.mxu0 %v433
        %467 = vmatprep.subr.bf16.mxu0 %v436
        %468 = vmatpush1.bf16.msra.mxu0 %v435
        %469 = vmatprep.subr.bf16.mxu0 %v438
        %470 = vmatpush1.bf16.msra.mxu0 %v437
        %471 = vmatprep.subr.bf16.mxu0 %v440
        %472 = vmatpush1.bf16.msra.mxu0 %v439
        %473 = vmatprep.subr.bf16.mxu0 %v442
        %474 = vmatpush1.bf16.msra.mxu0 %v441
        %475 = vmatprep.subr.bf16.mxu0 %v444
        %476 = vmatpush1.bf16.msra.mxu0 %v443
        %477 = vmatprep.subr.bf16.mxu0 %v446
        %478 = vmatpush1.bf16.msra.mxu0 %v445
        %479 = vmatprep.subr.bf16.mxu0 0
        %480 = vmatpush1.bf16.msra.mxu0 0
        %481 = vmatprep.subr.bf16.mxu0 0
        %482 = vmatpush1.bf16.msra.mxu0 0
        %483 = vmatprep.subr.bf16.mxu0 0
        %484 = vmatpush1.bf16.msra.mxu0 0
        %485 = vmatprep.subr.bf16.mxu0 0
        %486 = vmatpush1.bf16.msra.mxu0 0
        %487 = vmatprep.subr.bf16.mxu0 0
        %488 = vmatpush1.bf16.msra.mxu0 0
        %489 = vmatprep.subr.bf16.mxu0 0
        %490 = vmatpush1.bf16.msra.mxu0 0
        %491 = vmatprep.subr.bf16.mxu0 0
        %492 = vmatpush1.bf16.msra.mxu0 0
        %493 = vmatprep.subr.bf16.mxu0 0
        %494 = vmatpush1.bf16.msra.mxu0 0
        %495 = vmatprep.mubr.bf16.mxu0 0
        %496 = vmatmul.mubr.bf16.gmra.mrb[0].mxu0 %v351
        %v497 = vpop.f32.mrb[0].mxu0
        %v498 = vadd.f32 %v280, %v497
        %v499 = vpop.f32.mrb[0].mxu0
        %v500 = vadd.f32 %v284, %v499
        %v501 = vpop.f32.mrb[0].mxu0
        %v502 = vadd.f32 %v280, %v501
        %v503 = vpop.f32.mrb[0].mxu0
        %v504 = vadd.f32 %v284, %v503
        %505 = vmatprep.mubr.bf16.mxu0 0
        %506 = vmatmul.mubr.bf16.gmra.mrb[0].mxu0 %v352
        %v507 = vpop.f32.mrb[0].mxu0
        %v508 = vadd.f32 %v280, %v507
        %v509 = vpop.f32.mrb[0].mxu0
        %v510 = vadd.f32 %v284, %v509
        %v511 = vpop.f32.mrb[0].mxu0
        %v512 = vadd.f32 %v280, %v511
        %v513 = vpop.f32.mrb[0].mxu0
        %v514 = vadd.f32 %v284, %v513
        %515 = vmatprep.mubr.bf16.mxu0 0
        %516 = vmatmul.mubr.bf16.gmra.mrb[0].mxu0 %v353
        %v517 = vpop.f32.mrb[0].mxu0
        %v518 = vadd.f32 %v280, %v517
        %v519 = vpop.f32.mrb[0].mxu0
        %v520 = vadd.f32 %v284, %v519
        %v521 = vpop.f32.mrb[0].mxu0
        %v522 = vadd.f32 %v280, %v521
        %v523 = vpop.f32.mrb[0].mxu0
        %v524 = vadd.f32 %v284, %v523
        %525 = vmatprep.mubr.bf16.mxu0 0
        %526 = vmatmul.mubr.bf16.gmra.mrb[0].mxu0 %v354
        %v527 = vpop.f32.mrb[0].mxu0
        %v528 = vadd.f32 %v280, %v527
        %v529 = vpop.f32.mrb[0].mxu0
        %v530 = vadd.f32 %v284, %v529
        %v531 = vpop.f32.mrb[0].mxu0
        %v532 = vadd.f32 %v280, %v531
        %v533 = vpop.f32.mrb[0].mxu0
        %v534 = vadd.f32 %v284, %v533
        %535 = vmatprep.mubr.bf16.mxu0 0
        %536 = vmatmul.mubr.bf16.gmra.mrb[0].mxu0 %v355
        %v537 = vpop.f32.mrb[0].mxu0
        %v538 = vadd.f32 %v280, %v537
        %v539 = vpop.f32.mrb[0].mxu0
        %v540 = vadd.f32 %v284, %v539
        %v541 = vpop.f32.mrb[0].mxu0
        %v542 = vadd.f32 %v280, %v541
        %v543 = vpop.f32.mrb[0].mxu0
        %v544 = vadd.f32 %v284, %v543
        %545 = vmatprep.mubr.bf16.mxu0 0
        %546 = vmatmul.mubr.bf16.gmra.mrb[0].mxu0 %v356
        %v547 = vpop.f32.mrb[0].mxu0
        %v548 = vadd.f32 %v280, %v547
        %v549 = vpop.f32.mrb[0].mxu0
        %v550 = vadd.f32 %v284, %v549
        %v551 = vpop.f32.mrb[0].mxu0
        %v552 = vadd.f32 %v280, %v551
        %v553 = vpop.f32.mrb[0].mxu0
        %v554 = vadd.f32 %v284, %v553
        %555 = vmatprep.mubr.bf16.mxu0 0
        %556 = vmatmul.mubr.bf16.gmra.mrb[0].mxu0 %v357
        %v557 = vpop.f32.mrb[0].mxu0
        %v558 = vadd.f32 %v280, %v557
        %v559 = vpop.f32.mrb[0].mxu0
        %v560 = vadd.f32 %v284, %v559
        %v561 = vpop.f32.mrb[0].mxu0
        %v562 = vadd.f32 %v280, %v561
        %v563 = vpop.f32.mrb[0].mxu0
        %v564 = vadd.f32 %v284, %v563
        %565 = vmatprep.mubr.bf16.mxu0 0
        %566 = vmatmul.mubr.bf16.gmra.mrb[0].mxu0 %v358
        %v567 = vpop.f32.mrb[0].mxu0
        %v568 = vadd.f32 %v280, %v567
        %v569 = vpop.f32.mrb[0].mxu0
        %v570 = vadd.f32 %v284, %v569
        %v571 = vpop.f32.mrb[0].mxu0
        %v572 = vadd.f32 %v280, %v571
        %v573 = vpop.f32.mrb[0].mxu0
        %v574 = vadd.f32 %v284, %v573
        %575 = vmatprep.mubr.bf16.mxu0 0
        %576 = vmatmul.mubr.bf16.gmra.mrb[0].mxu0 %v359
        %v577 = vpop.f32.mrb[0].mxu0
        %v578 = vadd.f32 %v280, %v577
        %v579 = vpop.f32.mrb[0].mxu0
        %v580 = vadd.f32 %v284, %v579
        %v581 = vpop.f32.mrb[0].mxu0
        %v582 = vadd.f32 %v280, %v581
        %v583 = vpop.f32.mrb[0].mxu0
        %v584 = vadd.f32 %v284, %v583
        %585 = vmatprep.mubr.bf16.mxu0 0
        %586 = vmatmul.mubr.bf16.gmra.mrb[0].mxu0 %v360
        %v587 = vpop.f32.mrb[0].mxu0
        %v588 = vadd.f32 %v280, %v587
        %v589 = vpop.f32.mrb[0].mxu0
        %v590 = vadd.f32 %v284, %v589
        %v591 = vpop.f32.mrb[0].mxu0
        %v592 = vadd.f32 %v280, %v591
        %v593 = vpop.f32.mrb[0].mxu0
        %v594 = vadd.f32 %v284, %v593
        %595 = vmatprep.mubr.bf16.mxu0 0
        %596 = vmatmul.mubr.bf16.gmra.mrb[0].mxu0 %v361
        %v597 = vpop.f32.mrb[0].mxu0
        %v598 = vadd.f32 %v280, %v597
        %v599 = vpop.f32.mrb[0].mxu0
        %v600 = vadd.f32 %v284, %v599
        %v601 = vpop.f32.mrb[0].mxu0
        %v602 = vadd.f32 %v280, %v601
        %v603 = vpop.f32.mrb[0].mxu0
        %v604 = vadd.f32 %v284, %v603
        %605 = vmatprep.mubr.bf16.mxu0 0
        %606 = vmatmul.mubr.bf16.gmra.mrb[0].mxu0 %v362
        %v607 = vpop.f32.mrb[0].mxu0
        %v608 = vadd.f32 %v280, %v607
        %v609 = vpop.f32.mrb[0].mxu0
        %v610 = vadd.f32 %v284, %v609
        %v611 = vpop.f32.mrb[0].mxu0
        %v612 = vadd.f32 %v280, %v611
        %v613 = vpop.f32.mrb[0].mxu0
        %v614 = vadd.f32 %v284, %v613
        %615 = vmatprep.mubr.bf16.mxu0 0
        %616 = vmatmul.mubr.bf16.gmra.mrb[0].mxu0 %v363
        %v617 = vpop.f32.mrb[0].mxu0
        %v618 = vadd.f32 %v280, %v617
        %v619 = vpop.f32.mrb[0].mxu0
        %v620 = vadd.f32 %v284, %v619
        %v621 = vpop.f32.mrb[0].mxu0
        %v622 = vadd.f32 %v280, %v621
        %v623 = vpop.f32.mrb[0].mxu0
        %v624 = vadd.f32 %v284, %v623
        %625 = vmatprep.mubr.bf16.mxu0 0
        %626 = vmatmul.mubr.bf16.gmra.mrb[0].mxu0 %v364
        %v627 = vpop.f32.mrb[0].mxu0
        %v628 = vadd.f32 %v280, %v627
        %v629 = vpop.f32.mrb[0].mxu0
        %v630 = vadd.f32 %v284, %v629
        %v631 = vpop.f32.mrb[0].mxu0
        %v632 = vadd.f32 %v280, %v631
        %v633 = vpop.f32.mrb[0].mxu0
        %v634 = vadd.f32 %v284, %v633
        %635 = vmatprep.mubr.bf16.mxu0 0
        %636 = vmatmul.mubr.bf16.gmra.mrb[0].mxu0 %v365
        %v637 = vpop.f32.mrb[0].mxu0
        %v638 = vadd.f32 %v280, %v637
        %v639 = vpop.f32.mrb[0].mxu0
        %v640 = vadd.f32 %v284, %v639
        %v641 = vpop.f32.mrb[0].mxu0
        %v642 = vadd.f32 %v280, %v641
        %v643 = vpop.f32.mrb[0].mxu0
        %v644 = vadd.f32 %v284, %v643
        %645 = vmatprep.mubr.bf16.mxu0 0
        %646 = vmatmul.mubr.bf16.gmra.mrb[0].mxu0 %v366
        %v647 = vpop.f32.mrb[0].mxu0
        %v648 = vadd.f32 %v280, %v647
        %v649 = vpop.f32.mrb[0].mxu0
        %v650 = vadd.f32 %v284, %v649
        %v651 = vpop.f32.mrb[0].mxu0
        %v652 = vadd.f32 %v280, %v651
        %v653 = vpop.f32.mrb[0].mxu0
        %v654 = vadd.f32 %v284, %v653
        %655 = vdwg.mxu0
        %v656 = vmul.f32 %v498, 0.5
        %v657 = vmul.f32 %v500, 0.5
        %v658 = vmul.f32 %v502, 0.5
        %v659 = vmul.f32 %v504, 0.5
        %v660 = vmul.f32 %v508, 0.5
        %v661 = vmul.f32 %v510, 0.5
        %v662 = vmul.f32 %v512, 0.5
        %v663 = vmul.f32 %v514, 0.5
        %v664 = vmul.f32 %v518, 0.5
        %v665 = vmul.f32 %v520, 0.5
        %v666 = vmul.f32 %v522, 0.5
        %v667 = vmul.f32 %v524, 0.5
        %v668 = vmul.f32 %v528, 0.5
        %v669 = vmul.f32 %v530, 0.5
        %v670 = vmul.f32 %v532, 0.5
        %v671 = vmul.f32 %v534, 0.5
        %v672 = vmul.f32 %v538, 0.5
        %v673 = vmul.f32 %v540, 0.5
        %v674 = vmul.f32 %v542, 0.5
        %v675 = vmul.f32 %v544, 0.5
        %v676 = vmul.f32 %v548, 0.5
        %v677 = vmul.f32 %v550, 0.5
        %v678 = vmul.f32 %v552, 0.5
        %v679 = vmul.f32 %v554, 0.5
        %v680 = vmul.f32 %v558, 0.5
        %v681 = vmul.f32 %v560, 0.5
        %v682 = vmul.f32 %v562, 0.5
        %v683 = vmul.f32 %v564, 0.5
        %v684 = vmul.f32 %v568, 0.5
        %v685 = vmul.f32 %v570, 0.5
        %v686 = vmul.f32 %v572, 0.5
        %v687 = vmul.f32 %v574, 0.5
        %v688 = vmul.f32 %v578, 0.5
        %v689 = vmul.f32 %v580, 0.5
        %v690 = vmul.f32 %v582, 0.5
        %v691 = vmul.f32 %v584, 0.5
        %v692 = vmul.f32 %v588, 0.5
        %v693 = vmul.f32 %v590, 0.5
        %v694 = vmul.f32 %v592, 0.5
        %v695 = vmul.f32 %v594, 0.5
        %v696 = vmul.f32 %v598, 0.5
        %v697 = vmul.f32 %v600, 0.5
        %v698 = vmul.f32 %v602, 0.5
        %v699 = vmul.f32 %v604, 0.5
        %v700 = vmul.f32 %v608, 0.5
        %v701 = vmul.f32 %v610, 0.5
        %v702 = vmul.f32 %v612, 0.5
        %v703 = vmul.f32 %v614, 0.5
        %v704 = vmul.f32 %v618, 0.5
        %v705 = vmul.f32 %v620, 0.5
        %v706 = vmul.f32 %v622, 0.5
        %v707 = vmul.f32 %v624, 0.5
        %v708 = vmul.f32 %v628, 0.5
        %v709 = vmul.f32 %v630, 0.5
        %v710 = vmul.f32 %v632, 0.5
        %v711 = vmul.f32 %v634, 0.5
        %v712 = vmul.f32 %v638, 0.5
        %v713 = vmul.f32 %v640, 0.5
        %v714 = vmul.f32 %v642, 0.5
        %v715 = vmul.f32 %v644, 0.5
        %v716 = vmul.f32 %v648, 0.5
        %v717 = vmul.f32 %v650, 0.5
        %v718 = vmul.f32 %v652, 0.5
        %v719 = vmul.f32 %v654, 0.5
        %v720 = vmul.f32 %v498, 0.70710677
        %v721 = vmul.f32 %v500, 0.70710677
        %v722 = vmul.f32 %v502, 0.70710677
        %v723 = vmul.f32 %v504, 0.70710677
        %v724 = vmul.f32 %v508, 0.70710677
        %v725 = vmul.f32 %v510, 0.70710677
        %v726 = vmul.f32 %v512, 0.70710677
        %v727 = vmul.f32 %v514, 0.70710677
        %v728 = vmul.f32 %v518, 0.70710677
        %v729 = vmul.f32 %v520, 0.70710677
        %v730 = vmul.f32 %v522, 0.70710677
        %v731 = vmul.f32 %v524, 0.70710677
        %v732 = vmul.f32 %v528, 0.70710677
        %v733 = vmul.f32 %v530, 0.70710677
        %v734 = vmul.f32 %v532, 0.70710677
        %v735 = vmul.f32 %v534, 0.70710677
        %v736 = vmul.f32 %v538, 0.70710677
        %v737 = vmul.f32 %v540, 0.70710677
        %v738 = vmul.f32 %v542, 0.70710677
        %v739 = vmul.f32 %v544, 0.70710677
        %v740 = vmul.f32 %v548, 0.70710677
        %v741 = vmul.f32 %v550, 0.70710677
        %v742 = vmul.f32 %v552, 0.70710677
        %v743 = vmul.f32 %v554, 0.70710677
        %v744 = vmul.f32 %v558, 0.70710677
        %v745 = vmul.f32 %v560, 0.70710677
        %v746 = vmul.f32 %v562, 0.70710677
        %v747 = vmul.f32 %v564, 0.70710677
        %v748 = vmul.f32 %v568, 0.70710677
        %v749 = vmul.f32 %v570, 0.70710677
        %v750 = vmul.f32 %v572, 0.70710677
        %v751 = vmul.f32 %v574, 0.70710677
        %v752 = vmul.f32 %v578, 0.70710677
        %v753 = vmul.f32 %v580, 0.70710677
        %v754 = vmul.f32 %v582, 0.70710677
        %v755 = vmul.f32 %v584, 0.70710677
        %v756 = vmul.f32 %v588, 0.70710677
        %v757 = vmul.f32 %v590, 0.70710677
        %v758 = vmul.f32 %v592, 0.70710677
        %v759 = vmul.f32 %v594, 0.70710677
        %v760 = vmul.f32 %v598, 0.70710677
        %v761 = vmul.f32 %v600, 0.70710677
        %v762 = vmul.f32 %v602, 0.70710677
        %v763 = vmul.f32 %v604, 0.70710677
        %v764 = vmul.f32 %v608, 0.70710677
        %v765 = vmul.f32 %v610, 0.70710677
        %v766 = vmul.f32 %v612, 0.70710677
        %v767 = vmul.f32 %v614, 0.70710677
        %v768 = vmul.f32 %v618, 0.70710677
        %v769 = vmul.f32 %v620, 0.70710677
        %v770 = vmul.f32 %v622, 0.70710677
        %v771 = vmul.f32 %v624, 0.70710677
        %v772 = vmul.f32 %v628, 0.70710677
        %v773 = vmul.f32 %v630, 0.70710677
        %v774 = vmul.f32 %v632, 0.70710677
        %v775 = vmul.f32 %v634, 0.70710677
        %v776 = vmul.f32 %v638, 0.70710677
        %v777 = vmul.f32 %v640, 0.70710677
        %v778 = vmul.f32 %v642, 0.70710677
        %v779 = vmul.f32 %v644, 0.70710677
        %v780 = vmul.f32 %v648, 0.70710677
        %v781 = vmul.f32 %v650, 0.70710677
        %v782 = vmul.f32 %v652, 0.70710677
        %v783 = vmul.f32 %v654, 0.70710677
        %v784 = verf.f32.pop %v720
        %v785 = verf.f32.pop %v721
        %v786 = verf.f32.pop %v722
        %v787 = verf.f32.pop %v723
        %v788 = verf.f32.pop %v724
        %v789 = verf.f32.pop %v725
        %v790 = verf.f32.pop %v726
        %v791 = verf.f32.pop %v727
        %v792 = verf.f32.pop %v728
        %v793 = verf.f32.pop %v729
        %v794 = verf.f32.pop %v730
        %v795 = verf.f32.pop %v731
        %v796 = verf.f32.pop %v732
        %v797 = verf.f32.pop %v733
        %v798 = verf.f32.pop %v734
        %v799 = verf.f32.pop %v735
        %v800 = verf.f32.pop %v736
        %v801 = verf.f32.pop %v737
        %v802 = verf.f32.pop %v738
        %v803 = verf.f32.pop %v739
        %v804 = verf.f32.pop %v740
        %v805 = verf.f32.pop %v741
        %v806 = verf.f32.pop %v742
        %v807 = verf.f32.pop %v743
        %v808 = verf.f32.pop %v744
        %v809 = verf.f32.pop %v745
        %v810 = verf.f32.pop %v746
        %v811 = verf.f32.pop %v747
        %v812 = verf.f32.pop %v748
        %v813 = verf.f32.pop %v749
        %v814 = verf.f32.pop %v750
        %v815 = verf.f32.pop %v751
        %v816 = verf.f32.pop %v752
        %v817 = verf.f32.pop %v753
        %v818 = verf.f32.pop %v754
        %v819 = verf.f32.pop %v755
        %v820 = verf.f32.pop %v756
        %v821 = verf.f32.pop %v757
        %v822 = verf.f32.pop %v758
        %v823 = verf.f32.pop %v759
        %v824 = verf.f32.pop %v760
        %v825 = verf.f32.pop %v761
        %v826 = verf.f32.pop %v762
        %v827 = verf.f32.pop %v763
        %v828 = verf.f32.pop %v764
        %v829 = verf.f32.pop %v765
        %v830 = verf.f32.pop %v766
        %v831 = verf.f32.pop %v767
        %v832 = verf.f32.pop %v768
        %v833 = verf.f32.pop %v769
        %v834 = verf.f32.pop %v770
        %v835 = verf.f32.pop %v771
        %v836 = verf.f32.pop %v772
        %v837 = verf.f32.pop %v773
        %v838 = verf.f32.pop %v774
        %v839 = verf.f32.pop %v775
        %v840 = verf.f32.pop %v776
        %v841 = verf.f32.pop %v777
        %v842 = verf.f32.pop %v778
        %v843 = verf.f32.pop %v779
        %v844 = verf.f32.pop %v780
        %v845 = verf.f32.pop %v781
        %v846 = verf.f32.pop %v782
        %v847 = verf.f32.pop %v783
        %v848 = vadd.f32 %v784, 1.0
        %v849 = vadd.f32 %v785, 1.0
        %v850 = vadd.f32 %v786, 1.0
        %v851 = vadd.f32 %v787, 1.0
        %v852 = vadd.f32 %v788, 1.0
        %v853 = vadd.f32 %v789, 1.0
        %v854 = vadd.f32 %v790, 1.0
        %v855 = vadd.f32 %v791, 1.0
        %v856 = vadd.f32 %v792, 1.0
        %v857 = vadd.f32 %v793, 1.0
        %v858 = vadd.f32 %v794, 1.0
        %v859 = vadd.f32 %v795, 1.0
        %v860 = vadd.f32 %v796, 1.0
        %v861 = vadd.f32 %v797, 1.0
        %v862 = vadd.f32 %v798, 1.0
        %v863 = vadd.f32 %v799, 1.0
        %v864 = vadd.f32 %v800, 1.0
        %v865 = vadd.f32 %v801, 1.0
        %v866 = vadd.f32 %v802, 1.0
        %v867 = vadd.f32 %v803, 1.0
        %v868 = vadd.f32 %v804, 1.0
        %v869 = vadd.f32 %v805, 1.0
        %v870 = vadd.f32 %v806, 1.0
        %v871 = vadd.f32 %v807, 1.0
        %v872 = vadd.f32 %v808, 1.0
        %v873 = vadd.f32 %v809, 1.0
        %v874 = vadd.f32 %v810, 1.0
        %v875 = vadd.f32 %v811, 1.0
        %v876 = vadd.f32 %v812, 1.0
        %v877 = vadd.f32 %v813, 1.0
        %v878 = vadd.f32 %v814, 1.0
        %v879 = vadd.f32 %v815, 1.0
        %v880 = vadd.f32 %v816, 1.0
        %v881 = vadd.f32 %v817, 1.0
        %v882 = vadd.f32 %v818, 1.0
        %v883 = vadd.f32 %v819, 1.0
        %v884 = vadd.f32 %v820, 1.0
        %v885 = vadd.f32 %v821, 1.0
        %v886 = vadd.f32 %v822, 1.0
        %v887 = vadd.f32 %v823, 1.0
        %v888 = vadd.f32 %v824, 1.0
        %v889 = vadd.f32 %v825, 1.0
        %v890 = vadd.f32 %v826, 1.0
        %v891 = vadd.f32 %v827, 1.0
        %v892 = vadd.f32 %v828, 1.0
        %v893 = vadd.f32 %v829, 1.0
        %v894 = vadd.f32 %v830, 1.0
        %v895 = vadd.f32 %v831, 1.0
        %v896 = vadd.f32 %v832, 1.0
        %v897 = vadd.f32 %v833, 1.0
        %v898 = vadd.f32 %v834, 1.0
        %v899 = vadd.f32 %v835, 1.0
        %v900 = vadd.f32 %v836, 1.0
        %v901 = vadd.f32 %v837, 1.0
        %v902 = vadd.f32 %v838, 1.0
        %v903 = vadd.f32 %v839, 1.0
        %v904 = vadd.f32 %v840, 1.0
        %v905 = vadd.f32 %v841, 1.0
        %v906 = vadd.f32 %v842, 1.0
        %v907 = vadd.f32 %v843, 1.0
        %v908 = vadd.f32 %v844, 1.0
        %v909 = vadd.f32 %v845, 1.0
        %v910 = vadd.f32 %v846, 1.0
        %v911 = vadd.f32 %v847, 1.0
        %v912 = vmul.f32 %v656, %v848
        %v913 = vmul.f32 %v657, %v849
        %v914 = vmul.f32 %v658, %v850
        %v915 = vmul.f32 %v659, %v851
        %v916 = vmul.f32 %v660, %v852
        %v917 = vmul.f32 %v661, %v853
        %v918 = vmul.f32 %v662, %v854
        %v919 = vmul.f32 %v663, %v855
        %v920 = vmul.f32 %v664, %v856
        %v921 = vmul.f32 %v665, %v857
        %v922 = vmul.f32 %v666, %v858
        %v923 = vmul.f32 %v667, %v859
        %v924 = vmul.f32 %v668, %v860
        %v925 = vmul.f32 %v669, %v861
        %v926 = vmul.f32 %v670, %v862
        %v927 = vmul.f32 %v671, %v863
        %v928 = vmul.f32 %v672, %v864
        %v929 = vmul.f32 %v673, %v865
        %v930 = vmul.f32 %v674, %v866
        %v931 = vmul.f32 %v675, %v867
        %v932 = vmul.f32 %v676, %v868
        %v933 = vmul.f32 %v677, %v869
        %v934 = vmul.f32 %v678, %v870
        %v935 = vmul.f32 %v679, %v871
        %v936 = vmul.f32 %v680, %v872
        %v937 = vmul.f32 %v681, %v873
        %v938 = vmul.f32 %v682, %v874
        %v939 = vmul.f32 %v683, %v875
        %v940 = vmul.f32 %v684, %v876
        %v941 = vmul.f32 %v685, %v877
        %v942 = vmul.f32 %v686, %v878
        %v943 = vmul.f32 %v687, %v879
        %v944 = vmul.f32 %v688, %v880
        %v945 = vmul.f32 %v689, %v881
        %v946 = vmul.f32 %v690, %v882
        %v947 = vmul.f32 %v691, %v883
        %v948 = vmul.f32 %v692, %v884
        %v949 = vmul.f32 %v693, %v885
        %v950 = vmul.f32 %v694, %v886
        %v951 = vmul.f32 %v695, %v887
        %v952 = vmul.f32 %v696, %v888
        %v953 = vmul.f32 %v697, %v889
        %v954 = vmul.f32 %v698, %v890
        %v955 = vmul.f32 %v699, %v891
        %v956 = vmul.f32 %v700, %v892
        %v957 = vmul.f32 %v701, %v893
        %v958 = vmul.f32 %v702, %v894
        %v959 = vmul.f32 %v703, %v895
        %v960 = vmul.f32 %v704, %v896
        %v961 = vmul.f32 %v705, %v897
        %v962 = vmul.f32 %v706, %v898
        %v963 = vmul.f32 %v707, %v899
        %v964 = vmul.f32 %v708, %v900
        %v965 = vmul.f32 %v709, %v901
        %v966 = vmul.f32 %v710, %v902
        %v967 = vmul.f32 %v711, %v903
        %v968 = vmul.f32 %v712, %v904
        %v969 = vmul.f32 %v713, %v905
        %v970 = vmul.f32 %v714, %v906
        %v971 = vmul.f32 %v715, %v907
        %v972 = vmul.f32 %v716, %v908
        %v973 = vmul.f32 %v717, %v909
        %v974 = vmul.f32 %v718, %v910
        %v975 = vmul.f32 %v719, %v911
        %v976 = vpack.c.bf16 %v914, %v912
        %v977 = vpack.c.bf16 %v915, %v913
        %v978 = vpack.c.bf16 %v918, %v916
        %v979 = vpack.c.bf16 %v919, %v917
        %v980 = vpack.c.bf16 %v922, %v920
        %v981 = vpack.c.bf16 %v923, %v921
        %v982 = vpack.c.bf16 %v926, %v924
        %v983 = vpack.c.bf16 %v927, %v925
        %v984 = vpack.c.bf16 %v930, %v928
        %v985 = vpack.c.bf16 %v931, %v929
        %v986 = vpack.c.bf16 %v934, %v932
        %v987 = vpack.c.bf16 %v935, %v933
        %v988 = vpack.c.bf16 %v938, %v936
        %v989 = vpack.c.bf16 %v939, %v937
        %v990 = vpack.c.bf16 %v942, %v940
        %v991 = vpack.c.bf16 %v943, %v941
        %v992 = vpack.c.bf16 %v946, %v944
        %v993 = vpack.c.bf16 %v947, %v945
        %v994 = vpack.c.bf16 %v950, %v948
        %v995 = vpack.c.bf16 %v951, %v949
        %v996 = vpack.c.bf16 %v954, %v952
        %v997 = vpack.c.bf16 %v955, %v953
        %v998 = vpack.c.bf16 %v958, %v956
        %v999 = vpack.c.bf16 %v959, %v957
        %v1000 = vpack.c.bf16 %v962, %v960
        %v1001 = vpack.c.bf16 %v963, %v961
        %v1002 = vpack.c.bf16 %v966, %v964
        %v1003 = vpack.c.bf16 %v967, %v965
        %v1004 = vpack.c.bf16 %v970, %v968
        %v1005 = vpack.c.bf16 %v971, %v969
        %v1006 = vpack.c.bf16 %v974, %v972
        %v1007 = vpack.c.bf16 %v975, %v973
        %v1008 = vld [vmem:[%s3] sm:$0xff]
        %v1009 = vld [vmem:[%s3 + $0x8] sm:$0xff]
        %v1010 = vld [vmem:[%s3 + $0x10] sm:$0xff]
        %v1011 = vld [vmem:[%s3 + $0x18] sm:$0xff]
        %v1012 = vld [vmem:[%s3 + $0x20] sm:$0xff]
        %v1013 = vld [vmem:[%s3 + $0x28] sm:$0xff]
        %v1014 = vld [vmem:[%s3 + $0x30] sm:$0xff]
        %v1015 = vld [vmem:[%s3 + $0x38] sm:$0xff]
        %v1016 = vld [vmem:[%s3 + $0x40] sm:$0xff]
        %v1017 = vld [vmem:[%s3 + $0x48] sm:$0xff]
        %v1018 = vld [vmem:[%s3 + $0x50] sm:$0xff]
        %v1019 = vld [vmem:[%s3 + $0x58] sm:$0xff]
        %v1020 = vld [vmem:[%s3 + $0x60] sm:$0xff]
        %v1021 = vld [vmem:[%s3 + $0x68] sm:$0xff]
        %v1022 = vld [vmem:[%s3 + $0x70] sm:$0xff]
        %v1023 = vld [vmem:[%s3 + $0x78] sm:$0xff]
        %v1024 = vld [vmem:[%s3 + $0x80] sm:$0xff]
        %v1025 = vld [vmem:[%s3 + $0x88] sm:$0xff]
        %v1026 = vld [vmem:[%s3 + $0x90] sm:$0xff]
        %v1027 = vld [vmem:[%s3 + $0x98] sm:$0xff]
        %v1028 = vld [vmem:[%s3 + $0xa0] sm:$0xff]
        %v1029 = vld [vmem:[%s3 + $0xa8] sm:$0xff]
        %v1030 = vld [vmem:[%s3 + $0xb0] sm:$0xff]
        %v1031 = vld [vmem:[%s3 + $0xb8] sm:$0xff]
        %v1032 = vld [vmem:[%s3 + $0xc0] sm:$0xff]
        %v1033 = vld [vmem:[%s3 + $0xc8] sm:$0xff]
        %v1034 = vld [vmem:[%s3 + $0xd0] sm:$0xff]
        %v1035 = vld [vmem:[%s3 + $0xd8] sm:$0xff]
        %v1036 = vld [vmem:[%s3 + $0xe0] sm:$0xff]
        %v1037 = vld [vmem:[%s3 + $0xe8] sm:$0xff]
        %v1038 = vld [vmem:[%s3 + $0xf0] sm:$0xff]
        %v1039 = vld [vmem:[%s3 + $0xf8] sm:$0xff]
        %v1040 = vld [vmem:[%s4] sm:$0x3]
        %v1042 = vlaneseq
        %v1043 = vshrl.u32 %v1042, 7
        %v1044 = vsub.s32 0, %v1043
        %v1045 = vrot.slane %v1040, %v1044
        %v1046 = vlaneseq
        %v1047 = vshrl.u32 %v1046, 7
        %v1048 = vsub.s32 1, %v1047
        %v1049 = vrot.slane %v1040, %v1048
        %v1084 = vunpack.c.l.b16 %v1008
        %v1085 = vunpack.c.h.b16 %v1008
        %v1086 = vunpack.c.l.b16 %v1009
        %v1087 = vunpack.c.h.b16 %v1009
        %v1088 = vunpack.c.l.b16 %v1010
        %v1089 = vunpack.c.h.b16 %v1010
        %v1090 = vunpack.c.l.b16 %v1011
        %v1091 = vunpack.c.h.b16 %v1011
        %v1092 = vunpack.c.l.b16 %v1012
        %v1093 = vunpack.c.h.b16 %v1012
        %v1094 = vunpack.c.l.b16 %v1013
        %v1095 = vunpack.c.h.b16 %v1013
        %v1096 = vunpack.c.l.b16 %v1014
        %v1097 = vunpack.c.h.b16 %v1014
        %v1098 = vunpack.c.l.b16 %v1015
        %v1099 = vunpack.c.h.b16 %v1015
        %v1100 = vunpack.c.l.b16 %v1016
        %v1101 = vunpack.c.h.b16 %v1016
        %v1102 = vunpack.c.l.b16 %v1017
        %v1103 = vunpack.c.h.b16 %v1017
        %v1104 = vunpack.c.l.b16 %v1018
        %v1105 = vunpack.c.h.b16 %v1018
        %v1106 = vunpack.c.l.b16 %v1019
        %v1107 = vunpack.c.h.b16 %v1019
        %v1108 = vunpack.c.l.b16 %v1020
        %v1109 = vunpack.c.h.b16 %v1020
        %v1110 = vunpack.c.l.b16 %v1021
        %v1111 = vunpack.c.h.b16 %v1021
        %v1112 = vunpack.c.l.b16 %v1022
        %v1113 = vunpack.c.h.b16 %v1022
        %v1114 = vunpack.c.l.b16 %v1023
        %v1115 = vunpack.c.h.b16 %v1023
        %v1116 = vunpack.c.l.b16 %v1024
        %v1117 = vunpack.c.h.b16 %v1024
        %v1118 = vunpack.c.l.b16 %v1025
        %v1119 = vunpack.c.h.b16 %v1025
        %v1120 = vunpack.c.l.b16 %v1026
        %v1121 = vunpack.c.h.b16 %v1026
        %v1122 = vunpack.c.l.b16 %v1027
        %v1123 = vunpack.c.h.b16 %v1027
        %v1124 = vunpack.c.l.b16 %v1028
        %v1125 = vunpack.c.h.b16 %v1028
        %v1126 = vunpack.c.l.b16 %v1029
        %v1127 = vunpack.c.h.b16 %v1029
        %v1128 = vunpack.c.l.b16 %v1030
        %v1129 = vunpack.c.h.b16 %v1030
        %v1130 = vunpack.c.l.b16 %v1031
        %v1131 = vunpack.c.h.b16 %v1031
        %v1132 = vunpack.c.l.b16 %v1032
        %v1133 = vunpack.c.h.b16 %v1032
        %v1134 = vunpack.c.l.b16 %v1033
        %v1135 = vunpack.c.h.b16 %v1033
        %v1136 = vunpack.c.l.b16 %v1034
        %v1137 = vunpack.c.h.b16 %v1034
        %v1138 = vunpack.c.l.b16 %v1035
        %v1139 = vunpack.c.h.b16 %v1035
        %v1140 = vunpack.c.l.b16 %v1036
        %v1141 = vunpack.c.h.b16 %v1036
        %v1142 = vunpack.c.l.b16 %v1037
        %v1143 = vunpack.c.h.b16 %v1037
        %v1144 = vunpack.c.l.b16 %v1038
        %v1145 = vunpack.c.h.b16 %v1038
        %v1146 = vunpack.c.l.b16 %v1039
        %v1147 = vunpack.c.h.b16 %v1039
        %v1148 = vpack.c.b16 %v1086, %v1084
        %v1149 = vpack.c.b16 %v1087, %v1085
        %v1150 = vpack.c.b16 %v1090, %v1088
        %v1151 = vpack.c.b16 %v1091, %v1089
        %v1152 = vpack.c.b16 %v1094, %v1092
        %v1153 = vpack.c.b16 %v1095, %v1093
        %v1154 = vpack.c.b16 %v1098, %v1096
        %v1155 = vpack.c.b16 %v1099, %v1097
        %v1156 = vpack.c.b16 %v1102, %v1100
        %v1157 = vpack.c.b16 %v1103, %v1101
        %v1158 = vpack.c.b16 %v1106, %v1104
        %v1159 = vpack.c.b16 %v1107, %v1105
        %v1160 = vpack.c.b16 %v1110, %v1108
        %v1161 = vpack.c.b16 %v1111, %v1109
        %v1162 = vpack.c.b16 %v1114, %v1112
        %v1163 = vpack.c.b16 %v1115, %v1113
        %v1164 = vpack.c.b16 %v1118, %v1116
        %v1165 = vpack.c.b16 %v1119, %v1117
        %v1166 = vpack.c.b16 %v1122, %v1120
        %v1167 = vpack.c.b16 %v1123, %v1121
        %v1168 = vpack.c.b16 %v1126, %v1124
        %v1169 = vpack.c.b16 %v1127, %v1125
        %v1170 = vpack.c.b16 %v1130, %v1128
        %v1171 = vpack.c.b16 %v1131, %v1129
        %v1172 = vpack.c.b16 %v1134, %v1132
        %v1173 = vpack.c.b16 %v1135, %v1133
        %v1174 = vpack.c.b16 %v1138, %v1136
        %v1175 = vpack.c.b16 %v1139, %v1137
        %v1176 = vpack.c.b16 %v1142, %v1140
        %v1177 = vpack.c.b16 %v1143, %v1141
        %v1178 = vpack.c.b16 %v1146, %v1144
        %v1179 = vpack.c.b16 %v1147, %v1145
        %1212 = vmatprep.subr.bf16.mxu0 %v1149
        %1213 = vmatpush1.bf16.msra.mxu0 %v1148
        %1214 = vmatprep.subr.bf16.mxu0 %v1151
        %1215 = vmatpush1.bf16.msra.mxu0 %v1150
        %1216 = vmatprep.subr.bf16.mxu0 %v1153
        %1217 = vmatpush1.bf16.msra.mxu0 %v1152
        %1218 = vmatprep.subr.bf16.mxu0 %v1155
        %1219 = vmatpush1.bf16.msra.mxu0 %v1154
        %1220 = vmatprep.subr.bf16.mxu0 %v1157
        %1221 = vmatpush1.bf16.msra.mxu0 %v1156
        %1222 = vmatprep.subr.bf16.mxu0 %v1159
        %1223 = vmatpush1.bf16.msra.mxu0 %v1158
        %1224 = vmatprep.subr.bf16.mxu0 %v1161
        %1225 = vmatpush1.bf16.msra.mxu0 %v1160
        %1226 = vmatprep.subr.bf16.mxu0 %v1163
        %1227 = vmatpush1.bf16.msra.mxu0 %v1162
        %1228 = vmatprep.subr.bf16.mxu0 %v1165
        %1229 = vmatpush1.bf16.msra.mxu0 %v1164
        %1230 = vmatprep.subr.bf16.mxu0 %v1167
        %1231 = vmatpush1.bf16.msra.mxu0 %v1166
        %1232 = vmatprep.subr.bf16.mxu0 %v1169
        %1233 = vmatpush1.bf16.msra.mxu0 %v1168
        %1234 = vmatprep.subr.bf16.mxu0 %v1171
        %1235 = vmatpush1.bf16.msra.mxu0 %v1170
        %1236 = vmatprep.subr.bf16.mxu0 %v1173
        %1237 = vmatpush1.bf16.msra.mxu0 %v1172
        %1238 = vmatprep.subr.bf16.mxu0 %v1175
        %1239 = vmatpush1.bf16.msra.mxu0 %v1174
        %1240 = vmatprep.subr.bf16.mxu0 %v1177
        %1241 = vmatpush1.bf16.msra.mxu0 %v1176
        %1242 = vmatprep.subr.bf16.mxu0 %v1179
        %1243 = vmatpush1.bf16.msra.mxu0 %v1178
        %1244 = vmatprep.mubr.bf16.mxu0 %v977
        %1245 = vmatmul.mubr.bf16.gmra.mrb[0].mxu0 %v976
        %v1246 = vpop.f32.mrb[0].mxu0
        %v1247 = vadd.f32 %v1045, %v1246
        %v1248 = vpop.f32.mrb[0].mxu0
        %v1249 = vadd.f32 %v1049, %v1248
        %v1250 = vpop.f32.mrb[0].mxu0
        %v1251 = vadd.f32 %v1045, %v1250
        %v1252 = vpop.f32.mrb[0].mxu0
        %v1253 = vadd.f32 %v1049, %v1252
        %1254 = vmatprep.mubr.bf16.mxu0 %v979
        %1255 = vmatmul.mubr.bf16.gmra.mrb[0].mxu0 %v978
        %v1256 = vpop.f32.mrb[0].mxu0
        %v1257 = vadd.f32 %v1045, %v1256
        %v1258 = vpop.f32.mrb[0].mxu0
        %v1259 = vadd.f32 %v1049, %v1258
        %v1260 = vpop.f32.mrb[0].mxu0
        %v1261 = vadd.f32 %v1045, %v1260
        %v1262 = vpop.f32.mrb[0].mxu0
        %v1263 = vadd.f32 %v1049, %v1262
        %1264 = vmatprep.mubr.bf16.mxu0 %v981
        %1265 = vmatmul.mubr.bf16.gmra.mrb[0].mxu0 %v980
        %v1266 = vpop.f32.mrb[0].mxu0
        %v1267 = vadd.f32 %v1045, %v1266
        %v1268 = vpop.f32.mrb[0].mxu0
        %v1269 = vadd.f32 %v1049, %v1268
        %v1270 = vpop.f32.mrb[0].mxu0
        %v1271 = vadd.f32 %v1045, %v1270
        %v1272 = vpop.f32.mrb[0].mxu0
        %v1273 = vadd.f32 %v1049, %v1272
        %1274 = vmatprep.mubr.bf16.mxu0 %v983
        %1275 = vmatmul.mubr.bf16.gmra.mrb[0].mxu0 %v982
        %v1276 = vpop.f32.mrb[0].mxu0
        %v1277 = vadd.f32 %v1045, %v1276
        %v1278 = vpop.f32.mrb[0].mxu0
        %v1279 = vadd.f32 %v1049, %v1278
        %v1280 = vpop.f32.mrb[0].mxu0
        %v1281 = vadd.f32 %v1045, %v1280
        %v1282 = vpop.f32.mrb[0].mxu0
        %v1283 = vadd.f32 %v1049, %v1282
        %1284 = vmatprep.mubr.bf16.mxu0 %v985
        %1285 = vmatmul.mubr.bf16.gmra.mrb[0].mxu0 %v984
        %v1286 = vpop.f32.mrb[0].mxu0
        %v1287 = vadd.f32 %v1045, %v1286
        %v1288 = vpop.f32.mrb[0].mxu0
        %v1289 = vadd.f32 %v1049, %v1288
        %v1290 = vpop.f32.mrb[0].mxu0
        %v1291 = vadd.f32 %v1045, %v1290
        %v1292 = vpop.f32.mrb[0].mxu0
        %v1293 = vadd.f32 %v1049, %v1292
        %1294 = vmatprep.mubr.bf16.mxu0 %v987
        %1295 = vmatmul.mubr.bf16.gmra.mrb[0].mxu0 %v986
        %v1296 = vpop.f32.mrb[0].mxu0
        %v1297 = vadd.f32 %v1045, %v1296
        %v1298 = vpop.f32.mrb[0].mxu0
        %v1299 = vadd.f32 %v1049, %v1298
        %v1300 = vpop.f32.mrb[0].mxu0
        %v1301 = vadd.f32 %v1045, %v1300
        %v1302 = vpop.f32.mrb[0].mxu0
        %v1303 = vadd.f32 %v1049, %v1302
        %1304 = vmatprep.mubr.bf16.mxu0 %v989
        %1305 = vmatmul.mubr.bf16.gmra.mrb[0].mxu0 %v988
        %v1306 = vpop.f32.mrb[0].mxu0
        %v1307 = vadd.f32 %v1045, %v1306
        %v1308 = vpop.f32.mrb[0].mxu0
        %v1309 = vadd.f32 %v1049, %v1308
        %v1310 = vpop.f32.mrb[0].mxu0
        %v1311 = vadd.f32 %v1045, %v1310
        %v1312 = vpop.f32.mrb[0].mxu0
        %v1313 = vadd.f32 %v1049, %v1312
        %1314 = vmatprep.mubr.bf16.mxu0 %v991
        %1315 = vmatmul.mubr.bf16.gmra.mrb[0].mxu0 %v990
        %v1316 = vpop.f32.mrb[0].mxu0
        %v1317 = vadd.f32 %v1045, %v1316
        %v1318 = vpop.f32.mrb[0].mxu0
        %v1319 = vadd.f32 %v1049, %v1318
        %v1320 = vpop.f32.mrb[0].mxu0
        %v1321 = vadd.f32 %v1045, %v1320
        %v1322 = vpop.f32.mrb[0].mxu0
        %v1323 = vadd.f32 %v1049, %v1322
        %1324 = vmatprep.mubr.bf16.mxu0 %v993
        %1325 = vmatmul.mubr.bf16.gmra.mrb[0].mxu0 %v992
        %v1326 = vpop.f32.mrb[0].mxu0
        %v1327 = vadd.f32 %v1045, %v1326
        %v1328 = vpop.f32.mrb[0].mxu0
        %v1329 = vadd.f32 %v1049, %v1328
        %v1330 = vpop.f32.mrb[0].mxu0
        %v1331 = vadd.f32 %v1045, %v1330
        %v1332 = vpop.f32.mrb[0].mxu0
        %v1333 = vadd.f32 %v1049, %v1332
        %1334 = vmatprep.mubr.bf16.mxu0 %v995
        %1335 = vmatmul.mubr.bf16.gmra.mrb[0].mxu0 %v994
        %v1336 = vpop.f32.mrb[0].mxu0
        %v1337 = vadd.f32 %v1045, %v1336
        %v1338 = vpop.f32.mrb[0].mxu0
        %v1339 = vadd.f32 %v1049, %v1338
        %v1340 = vpop.f32.mrb[0].mxu0
        %v1341 = vadd.f32 %v1045, %v1340
        %v1342 = vpop.f32.mrb[0].mxu0
        %v1343 = vadd.f32 %v1049, %v1342
        %1344 = vmatprep.mubr.bf16.mxu0 %v997
        %1345 = vmatmul.mubr.bf16.gmra.mrb[0].mxu0 %v996
        %v1346 = vpop.f32.mrb[0].mxu0
        %v1347 = vadd.f32 %v1045, %v1346
        %v1348 = vpop.f32.mrb[0].mxu0
        %v1349 = vadd.f32 %v1049, %v1348
        %v1350 = vpop.f32.mrb[0].mxu0
        %v1351 = vadd.f32 %v1045, %v1350
        %v1352 = vpop.f32.mrb[0].mxu0
        %v1353 = vadd.f32 %v1049, %v1352
        %1354 = vmatprep.mubr.bf16.mxu0 %v999
        %1355 = vmatmul.mubr.bf16.gmra.mrb[0].mxu0 %v998
        %v1356 = vpop.f32.mrb[0].mxu0
        %v1357 = vadd.f32 %v1045, %v1356
        %v1358 = vpop.f32.mrb[0].mxu0
        %v1359 = vadd.f32 %v1049, %v1358
        %v1360 = vpop.f32.mrb[0].mxu0
        %v1361 = vadd.f32 %v1045, %v1360
        %v1362 = vpop.f32.mrb[0].mxu0
        %v1363 = vadd.f32 %v1049, %v1362
        %1364 = vmatprep.mubr.bf16.mxu0 %v1001
        %1365 = vmatmul.mubr.bf16.gmra.mrb[0].mxu0 %v1000
        %v1366 = vpop.f32.mrb[0].mxu0
        %v1367 = vadd.f32 %v1045, %v1366
        %v1368 = vpop.f32.mrb[0].mxu0
        %v1369 = vadd.f32 %v1049, %v1368
        %v1370 = vpop.f32.mrb[0].mxu0
        %v1371 = vadd.f32 %v1045, %v1370
        %v1372 = vpop.f32.mrb[0].mxu0
        %v1373 = vadd.f32 %v1049, %v1372
        %1374 = vmatprep.mubr.bf16.mxu0 %v1003
        %1375 = vmatmul.mubr.bf16.gmra.mrb[0].mxu0 %v1002
        %v1376 = vpop.f32.mrb[0].mxu0
        %v1377 = vadd.f32 %v1045, %v1376
        %v1378 = vpop.f32.mrb[0].mxu0
        %v1379 = vadd.f32 %v1049, %v1378
        %v1380 = vpop.f32.mrb[0].mxu0
        %v1381 = vadd.f32 %v1045, %v1380
        %v1382 = vpop.f32.mrb[0].mxu0
        %v1383 = vadd.f32 %v1049, %v1382
        %1384 = vmatprep.mubr.bf16.mxu0 %v1005
        %1385 = vmatmul.mubr.bf16.gmra.mrb[0].mxu0 %v1004
        %v1386 = vpop.f32.mrb[0].mxu0
        %v1387 = vadd.f32 %v1045, %v1386
        %v1388 = vpop.f32.mrb[0].mxu0
        %v1389 = vadd.f32 %v1049, %v1388
        %v1390 = vpop.f32.mrb[0].mxu0
        %v1391 = vadd.f32 %v1045, %v1390
        %v1392 = vpop.f32.mrb[0].mxu0
        %v1393 = vadd.f32 %v1049, %v1392
        %1394 = vmatprep.mubr.bf16.mxu0 %v1007
        %1395 = vmatmul.mubr.bf16.gmra.mrb[0].mxu0 %v1006
        %v1396 = vpop.f32.mrb[0].mxu0
        %v1397 = vadd.f32 %v1045, %v1396
        %v1398 = vpop.f32.mrb[0].mxu0
        %v1399 = vadd.f32 %v1049, %v1398
        %v1400 = vpop.f32.mrb[0].mxu0
        %v1401 = vadd.f32 %v1045, %v1400
        %v1402 = vpop.f32.mrb[0].mxu0
        %v1403 = vadd.f32 %v1049, %v1402
        %1404 = vdwg.mxu0
        %1405 = vst [vmem:[%s218] sm:$0xff] %v1247
        %1406 = vst [vmem:[%s218 + $0x8] sm:$0xff] %v1249
        %1407 = vst [vmem:[%s218 + $0x10] sm:$0xff] %v1251
        %1408 = vst [vmem:[%s218 + $0x18] sm:$0xff] %v1253
        %1409 = vst [vmem:[%s218 + $0x20] sm:$0xff] %v1257
        %1410 = vst [vmem:[%s218 + $0x28] sm:$0xff] %v1259
        %1411 = vst [vmem:[%s218 + $0x30] sm:$0xff] %v1261
        %1412 = vst [vmem:[%s218 + $0x38] sm:$0xff] %v1263
        %1413 = vst [vmem:[%s218 + $0x40] sm:$0xff] %v1267
        %1414 = vst [vmem:[%s218 + $0x48] sm:$0xff] %v1269
        %1415 = vst [vmem:[%s218 + $0x50] sm:$0xff] %v1271
        %1416 = vst [vmem:[%s218 + $0x58] sm:$0xff] %v1273
        %1417 = vst [vmem:[%s218 + $0x60] sm:$0xff] %v1277
        %1418 = vst [vmem:[%s218 + $0x68] sm:$0xff] %v1279
        %1419 = vst [vmem:[%s218 + $0x70] sm:$0xff] %v1281
        %1420 = vst [vmem:[%s218 + $0x78] sm:$0xff] %v1283
        %1421 = vst [vmem:[%s218 + $0x80] sm:$0xff] %v1287
        %1422 = vst [vmem:[%s218 + $0x88] sm:$0xff] %v1289
        %1423 = vst [vmem:[%s218 + $0x90] sm:$0xff] %v1291
        %1424 = vst [vmem:[%s218 + $0x98] sm:$0xff] %v1293
        %1425 = vst [vmem:[%s218 + $0xa0] sm:$0xff] %v1297
        %1426 = vst [vmem:[%s218 + $0xa8] sm:$0xff] %v1299
        %1427 = vst [vmem:[%s218 + $0xb0] sm:$0xff] %v1301
        %1428 = vst [vmem:[%s218 + $0xb8] sm:$0xff] %v1303
        %1429 = vst [vmem:[%s218 + $0xc0] sm:$0xff] %v1307
        %1430 = vst [vmem:[%s218 + $0xc8] sm:$0xff] %v1309
        %1431 = vst [vmem:[%s218 + $0xd0] sm:$0xff] %v1311
        %1432 = vst [vmem:[%s218 + $0xd8] sm:$0xff] %v1313
        %1433 = vst [vmem:[%s218 + $0xe0] sm:$0xff] %v1317
        %1434 = vst [vmem:[%s218 + $0xe8] sm:$0xff] %v1319
        %1435 = vst [vmem:[%s218 + $0xf0] sm:$0xff] %v1321
        %1436 = vst [vmem:[%s218 + $0xf8] sm:$0xff] %v1323
        %1437 = vst [vmem:[%s218 + $0x100] sm:$0xff] %v1327
        %1438 = vst [vmem:[%s218 + $0x108] sm:$0xff] %v1329
        %1439 = vst [vmem:[%s218 + $0x110] sm:$0xff] %v1331
        %1440 = vst [vmem:[%s218 + $0x118] sm:$0xff] %v1333
        %1441 = vst [vmem:[%s218 + $0x120] sm:$0xff] %v1337
        %1442 = vst [vmem:[%s218 + $0x128] sm:$0xff] %v1339
        %1443 = vst [vmem:[%s218 + $0x130] sm:$0xff] %v1341
        %1444 = vst [vmem:[%s218 + $0x138] sm:$0xff] %v1343
        %1445 = vst [vmem:[%s218 + $0x140] sm:$0xff] %v1347
        %1446 = vst [vmem:[%s218 + $0x148] sm:$0xff] %v1349
        %1447 = vst [vmem:[%s218 + $0x150] sm:$0xff] %v1351
        %1448 = vst [vmem:[%s218 + $0x158] sm:$0xff] %v1353
        %1449 = vst [vmem:[%s218 + $0x160] sm:$0xff] %v1357
        %1450 = vst [vmem:[%s218 + $0x168] sm:$0xff] %v1359
        %1451 = vst [vmem:[%s218 + $0x170] sm:$0xff] %v1361
        %1452 = vst [vmem:[%s218 + $0x178] sm:$0xff] %v1363
        %1453 = vst [vmem:[%s218 + $0x180] sm:$0xff] %v1367
        %1454 = vst [vmem:[%s218 + $0x188] sm:$0xff] %v1369
        %1455 = vst [vmem:[%s218 + $0x190] sm:$0xff] %v1371
        %1456 = vst [vmem:[%s218 + $0x198] sm:$0xff] %v1373
        %1457 = vst [vmem:[%s218 + $0x1a0] sm:$0xff] %v1377
        %1458 = vst [vmem:[%s218 + $0x1a8] sm:$0xff] %v1379
        %1459 = vst [vmem:[%s218 + $0x1b0] sm:$0xff] %v1381
        %1460 = vst [vmem:[%s218 + $0x1b8] sm:$0xff] %v1383
        %1461 = vst [vmem:[%s218 + $0x1c0] sm:$0xff] %v1387
        %1462 = vst [vmem:[%s218 + $0x1c8] sm:$0xff] %v1389
        %1463 = vst [vmem:[%s218 + $0x1d0] sm:$0xff] %v1391
        %1464 = vst [vmem:[%s218 + $0x1d8] sm:$0xff] %v1393
        %1465 = vst [vmem:[%s218 + $0x1e0] sm:$0xff] %v1397
        %1466 = vst [vmem:[%s218 + $0x1e8] sm:$0xff] %v1399
        %1467 = vst [vmem:[%s218 + $0x1f0] sm:$0xff] %v1401
        %1468 = vst [vmem:[%s218 + $0x1f8] sm:$0xff] %v1403
        %s1469 = sand.u32 %s137, 1
        %s1470 = scalar_lea.sflag [#allocation3], %s1469
        %s1471 = sand.u32 %s137, 1
        %s1472 = smul.addr %s1471, 512
        %s1473 = scalar_lea.vmem [#allocation2], %s1472
        // Predicated region
        $region41: #{mlp_block.1} parent=39 // pred_check
          %p1474 = pneg %p147
        $region42: #{mlp_block.1} parent=39 // pred_check_branch
          %1476 = sbr.rel (%p1474) target = $region44
        $region43: #{mlp_block.1} parent=39 // pred_region
          %s1477 = smul.u32 32, %s19
          %s1479 = ssub.s32 8192, 8192
          %1480 = vsyncadd %s1470, %s1479
          %s1481 = smul.addr %s1477, 2
          %s1482 = smul.addr %s1481, 128
          %s1483 = scalar_lea.hbm %s5, %s1482
          %s1484 = sshll.u32 %s1473, 4
          %s1485 = int_to_ptr.vmem [resolvable:$true] %s1484
          %1490 = dma.vmem_to_hbm [thread:$0]  %s1485, 8192, %s1483, %s1470, 256, 256, 16
        $region44: #{mlp_block.1} parent=39 // pred_fallthru
          _
      $region40: #{mlp_block.1} parent=5 // pred_fallthru
        _
      %p1491 = scmp.le.s32.totalorder 2, %s14
      // Predicated region
      $region45: #{mlp_block.1} parent=5 // pred_check
        %p1492 = pneg %p1491
      $region46: #{mlp_block.1} parent=5 // pred_check_branch
        %1494 = sbr.rel (%p1492) target = $region48
      $region47: #{mlp_block.1} parent=5 // pred_region
        %s1495 = ssub.s32 %s14, 2
        // Predicated region
        $region49: #{mlp_block.1} parent=47 // pred_check
          %p1496 = pneg %p153
        $region50: #{mlp_block.1} parent=47 // pred_check_branch
          %1498 = sbr.rel (%p1496) target = $region52
        $region51: #{mlp_block.1} parent=47 // pred_region
          %s1499 = sand.u32 %s138, 1
          %s1500 = scalar_lea.sflag [#allocation3], %s1499
          %s1501 = sand.u32 %s138, 1
          %s1502 = smul.addr %s1501, 512
          %s1503 = scalar_lea.vmem [#allocation2], %s1502
          %1504 = dma.done %s1500, 8192
        $region52: #{mlp_block.1} parent=47 // pred_fallthru
          _
      $region48: #{mlp_block.1} parent=5 // pred_fallthru
        _
    $region6: #{mlp_block.1} parent=1 // loop_footer
      %s18 = sadd.s32 1, %s14
    $region7: #{mlp_block.1} parent=1 // loop_footer_branch
      %13 = sbr.rel target = $region3
    $region8: #{mlp_block.1} parent=1 // loop_exit
      _
    %1505 = vsyncpa [#allocation3], 1
    %s1506 = scalar_lea.sflag [#allocation3], 1
    %1507 = vsyncpa %s1506, 1

</llo_original>
